<compile_context>
chip_gen: v6e
topology: v6e:2x2x1
jax: 0.10.0
libtpu: 0.0.40
codegen_flags: <defaults>
</compile_context>

<pallas_src>
import jax
import jax.numpy as jnp
from jax import lax
from jax.experimental import pallas as pl
from jax.experimental.pallas import tpu as pltpu

# ---- small, module-consistent config ----
BATCH = 2
SEQ = 8
HIDDEN = 32
NUM_HEADS = 4
NUM_KV_HEADS = 2
HEAD_DIM = HIDDEN // NUM_HEADS            # 8
NUM_KV_GROUPS = NUM_HEADS // NUM_KV_HEADS  # 2
KV_DIM = NUM_KV_HEADS * HEAD_DIM           # 16
INTERMEDIATE = 64
RMS_EPS = 1e-6
ROPE_THETA = 1_000_000.0
SCALE = HEAD_DIM ** -0.5
NEG_INF = -1e30


def _rms_norm(x, w, eps):
    var = jnp.mean(x * x, axis=-1, keepdims=True)
    return x * lax.rsqrt(var + eps) * w


def qwen2_block_kernel(x_ref, cos_ref, sin_ref,
                       ln1_ref, wqkv_ref, bqkv_ref, wo_ref,
                       ln2_ref, wgu_ref, wd_ref, out_ref):
    x = x_ref[...]                                   # (B*S, H) f32
    xn = _rms_norm(x, ln1_ref[...], RMS_EPS)

    # ---- fused QKV projection (single MXU pass, N=64) ----
    qkv = jnp.dot(xn, wqkv_ref[...],
                  preferred_element_type=jnp.float32) + bqkv_ref[...]
    q2d = qkv[:, :HIDDEN]                            # (B*S, NH*D)
    k2d = qkv[:, HIDDEN:HIDDEN + KV_DIM]             # (B*S, KV*D)
    v2d = qkv[:, HIDDEN + KV_DIM:]                   # (B*S, KV*D)

    # ---- head-batched layout: leading axis enumerates (batch, query head) ----
    def to_heads(t2d, head_of):
        tiles = [t2d[b * SEQ:(b + 1) * SEQ,
                     head_of(h) * HEAD_DIM:(head_of(h) + 1) * HEAD_DIM]
                 for b in range(BATCH) for h in range(NUM_HEADS)]
        return jnp.stack(tiles, axis=0)              # (B*NH, S, D)

    q_h = to_heads(q2d, lambda h: h)
    k_h = to_heads(k2d, lambda h: h // NUM_KV_GROUPS)   # GQA repeat_interleave
    v_h = to_heads(v2d, lambda h: h // NUM_KV_GROUPS)

    # ---- RoPE, applied once to the whole q stack and once to the k stack ----
    cos3 = cos_ref[...][None]                        # (1, S, D)
    sin3 = sin_ref[...][None]

    def rope(t):                                     # t: (N, S, D)
        t1 = t[..., :HEAD_DIM // 2]
        t2 = t[..., HEAD_DIM // 2:]
        rot = jnp.concatenate([-t2, t1], axis=-1)    # rotate_half
        return t * cos3 + rot * sin3

    q_h = rope(q_h)
    k_h = rope(k_h)

    # ---- GQA causal attention: all heads in one batched einsum pair ----
    scores = jnp.einsum('nqd,nkd->nqk', q_h, k_h,
                        preferred_element_type=jnp.float32) * SCALE
    causal = (lax.broadcasted_iota(jnp.int32, (1, SEQ, SEQ), 1) >=
              lax.broadcasted_iota(jnp.int32, (1, SEQ, SEQ), 2))
    scores = jnp.where(causal, scores, NEG_INF)
    scores = scores - jnp.max(scores, axis=-1, keepdims=True)
    p = jnp.exp(scores)
    p = p * pl.reciprocal(jnp.sum(p, axis=-1, keepdims=True), approx=True)
    ctx = jnp.einsum('nqk,nkd->nqd', p, v_h,
                     preferred_element_type=jnp.float32)   # (B*NH, S, D)

    # ---- merge heads back to (B*S, H) and o_proj ----
    rows = [jnp.concatenate([ctx[b * NUM_HEADS + h] for h in range(NUM_HEADS)],
                            axis=-1)                  # (S, H)
            for b in range(BATCH)]
    attn = jnp.concatenate(rows, axis=0)              # (B*S, H)
    attn = jnp.dot(attn, wo_ref[...], preferred_element_type=jnp.float32)

    # ---- residual + post-attn RMSNorm + fused SwiGLU MLP + residual ----
    h1 = x + attn
    hn = _rms_norm(h1, ln2_ref[...], RMS_EPS)

    gu = jnp.dot(hn, wgu_ref[...], preferred_element_type=jnp.float32)  # (B*S, 128)
    gate = gu[:, :INTERMEDIATE]
    up = gu[:, INTERMEDIATE:]
    act = gate * jax.nn.sigmoid(gate) * up            # silu(gate) * up
    down = jnp.dot(act, wd_ref[...], preferred_element_type=jnp.float32)

    out_ref[...] = h1 + down


def qwen2_block(x, cos, sin, fp):
    """x: (B, S, H); fp holds the fused weights ((in, out) layout)."""
    B, S, H = x.shape
    x2d = x.reshape(B * S, H)
    vmem = pl.BlockSpec(memory_space=pltpu.MemorySpace.VMEM)
    out2d = pl.pallas_call(
        qwen2_block_kernel,
        out_shape=jax.ShapeDtypeStruct((B * S, H), jnp.float32),
        in_specs=[vmem] * 10,
        out_specs=vmem,
    )(x2d, cos, sin,
      fp["ln1"], fp["wqkv"], fp["bqkv"], fp["wo"],
      fp["ln2"], fp["wgu"], fp["wd"])
    return out2d.reshape(B, S, H)


# ---- pure-JAX reference mirroring the PyTorch forward (unfused params) ----
def reference_block(x, cos, sin, p):
    def rms(t, w):
        var = jnp.mean(t * t, axis=-1, keepdims=True)
        return t * lax.rsqrt(var + RMS_EPS) * w[0]

    def rotate_half(t):
        t1, t2 = jnp.split(t, 2, axis=-1)
        return jnp.concatenate([-t2, t1], axis=-1)

    B, S, H = x.shape
    xn = rms(x, p["ln1"])
    q = xn @ p["wq"] + p["bq"][0]
    k = xn @ p["wk"] + p["bk"][0]
    v = xn @ p["wv"] + p["bv"][0]
    q = q.reshape(B, S, NUM_HEADS, HEAD_DIM).transpose(0, 2, 1, 3)
    k = k.reshape(B, S, NUM_KV_HEADS, HEAD_DIM).transpose(0, 2, 1, 3)
    v = v.reshape(B, S, NUM_KV_HEADS, HEAD_DIM).transpose(0, 2, 1, 3)
    q = q * cos + rotate_half(q) * sin
    k = k * cos + rotate_half(k) * sin
    k = jnp.repeat(k, NUM_KV_GROUPS, axis=1)
    v = jnp.repeat(v, NUM_KV_GROUPS, axis=1)
    scores = jnp.einsum("bhqd,bhkd->bhqk", q, k) * SCALE
    causal = jnp.tril(jnp.ones((S, S), dtype=bool))
    scores = jnp.where(causal, scores, -jnp.inf)
    attn = jax.nn.softmax(scores, axis=-1)
    o = jnp.einsum("bhqk,bhkd->bhqd", attn, v)
    o = o.transpose(0, 2, 1, 3).reshape(B, S, H) @ p["wo"]
    h1 = x + o
    hn = rms(h1, p["ln2"])
    mlp = (jax.nn.silu(hn @ p["wg"]) * (hn @ p["wu"])) @ p["wd"]
    return h1 + mlp


def make_rope(seq, dim, theta):
    inv_freq = 1.0 / (theta ** (jnp.arange(0, dim, 2, dtype=jnp.float32) / dim))
    pos = jnp.arange(seq, dtype=jnp.float32)
    freqs = pos[:, None] * inv_freq[None, :]
    emb = jnp.concatenate([freqs, freqs], axis=-1)
    return jnp.cos(emb), jnp.sin(emb)


if __name__ == "__main__":
    key = jax.random.PRNGKey(0)
    keys = jax.random.split(key, 16)
    nrm = lambda k, shape: (0.05 * jax.random.normal(k, shape)).astype(jnp.float32)

    params = {
        "ln1": jnp.ones((1, HIDDEN), jnp.float32) + nrm(keys[0], (1, HIDDEN)),
        "wq": nrm(keys[1], (HIDDEN, HIDDEN)),
        "bq": nrm(keys[2], (1, HIDDEN)),
        "wk": nrm(keys[3], (HIDDEN, KV_DIM)),
        "bk": nrm(keys[4], (1, KV_DIM)),
        "wv": nrm(keys[5], (HIDDEN, KV_DIM)),
        "bv": nrm(keys[6], (1, KV_DIM)),
        "wo": nrm(keys[7], (HIDDEN, HIDDEN)),
        "ln2": jnp.ones((1, HIDDEN), jnp.float32) + nrm(keys[8], (1, HIDDEN)),
        "wg": nrm(keys[9], (HIDDEN, INTERMEDIATE)),
        "wu": nrm(keys[10], (HIDDEN, INTERMEDIATE)),
        "wd": nrm(keys[11], (INTERMEDIATE, HIDDEN)),
    }

    # ---- wrapper-side fusion of weights (free, outside the kernel) ----
    fused = {
        "ln1": params["ln1"],
        "ln2": params["ln2"],
        "wqkv": jnp.concatenate([params["wq"], params["wk"], params["wv"]], axis=1),
        "bqkv": jnp.concatenate([params["bq"], params["bk"], params["bv"]], axis=1),
        "wo": params["wo"],
        "wgu": jnp.concatenate([params["wg"], params["wu"]], axis=1),   # (32, 128)
        "wd": params["wd"],
    }

    x = jax.random.normal(keys[12], (BATCH, SEQ, HIDDEN), jnp.float32)
    cos, sin = make_rope(SEQ, HEAD_DIM, ROPE_THETA)   # (S, D), broadcast over heads

    out = qwen2_block(x, cos, sin, fused)
    out = jax.block_until_ready(out)

    ref = reference_block(x, cos, sin, params)
    assert out.shape == (BATCH, SEQ, HIDDEN)
    # Tolerance widened slightly because the softmax denominator uses the EUP
    # approximate reciprocal (pl.reciprocal(..., approx=True)).
    assert jnp.allclose(out, ref, atol=2e-3, rtol=2e-3), "mismatch vs reference"

    print("KERNEL_OK")
</pallas_src>

<mosaic_0001>
module attributes {stable_mosaic.version = 11 : i64} {
  func.func @qwen2_block_kernel(%arg0: memref<16x32xf32, #tpu.memory_space<vmem>>, %arg1: memref<8x8xf32, #tpu.memory_space<vmem>>, %arg2: memref<8x8xf32, #tpu.memory_space<vmem>>, %arg3: memref<1x32xf32, #tpu.memory_space<vmem>>, %arg4: memref<32x64xf32, #tpu.memory_space<vmem>>, %arg5: memref<1x64xf32, #tpu.memory_space<vmem>>, %arg6: memref<32x32xf32, #tpu.memory_space<vmem>>, %arg7: memref<1x32xf32, #tpu.memory_space<vmem>>, %arg8: memref<32x128xf32, #tpu.memory_space<vmem>>, %arg9: memref<64x32xf32, #tpu.memory_space<vmem>>, %arg10: memref<16x32xf32, #tpu.memory_space<vmem>>) attributes {dimension_semantics = [], scalar_prefetch = 0 : i64, scratch_operands = 0 : i64, tpu.core_type = #tpu.core_type<tc>} {
    %c0 = arith.constant 0 : index
    %c0_0 = arith.constant 0 : index
    %0 = vector.load %arg0[%c0, %c0_0] : memref<16x32xf32, #tpu.memory_space<vmem>>, vector<16x32xf32>
    %c0_1 = arith.constant 0 : index
    %c0_2 = arith.constant 0 : index
    %1 = vector.load %arg3[%c0_1, %c0_2] : memref<1x32xf32, #tpu.memory_space<vmem>>, vector<1x32xf32>
    %2 = arith.mulf %0, %0 : vector<16x32xf32>
    %cst = arith.constant dense<0.000000e+00> : vector<16xf32>
    %3 = vector.multi_reduction <add>, %2, %cst [1] : vector<16x32xf32> to vector<16xf32>
    %4 = vector.shape_cast %3 : vector<16xf32> to vector<16x1xf32>
    %cst_3 = arith.constant 3.200000e+01 : f32
    %5 = vector.broadcast %cst_3 : f32 to vector<16x1xf32>
    %6 = arith.divf %4, %5 : vector<16x1xf32>
    %cst_4 = arith.constant 9.99999997E-7 : f32
    %7 = vector.broadcast %cst_4 : f32 to vector<16x1xf32>
    %8 = arith.addf %6, %7 : vector<16x1xf32>
    %9 = math.rsqrt %8 : vector<16x1xf32>
    %10 = vector.broadcast %9 : vector<16x1xf32> to vector<16x32xf32>
    %11 = arith.mulf %0, %10 : vector<16x32xf32>
    %12 = vector.broadcast %1 : vector<1x32xf32> to vector<16x32xf32>
    %13 = arith.mulf %11, %12 : vector<16x32xf32>
    %c0_5 = arith.constant 0 : index
    %c0_6 = arith.constant 0 : index
    %14 = vector.load %arg4[%c0_5, %c0_6] : memref<32x64xf32, #tpu.memory_space<vmem>>, vector<32x64xf32>
    %cst_7 = arith.constant dense<0.000000e+00> : vector<16x64xf32>
    %15 = tpu.matmul %13, %14, %cst_7 {dimension_numbers = #tpu.dot_dimension_numbers<[1], [0], [0], [1], [0, 0, 1, 1], [], []>} : vector<16x32xf32>, vector<32x64xf32>, vector<16x64xf32> -> vector<16x64xf32>
    %c0_8 = arith.constant 0 : index
    %c0_9 = arith.constant 0 : index
    %16 = vector.load %arg5[%c0_8, %c0_9] : memref<1x64xf32, #tpu.memory_space<vmem>>, vector<1x64xf32>
    %17 = vector.broadcast %16 : vector<1x64xf32> to vector<16x64xf32>
    %18 = arith.addf %15, %17 : vector<16x64xf32>
    %19 = vector.extract_strided_slice %18 {offsets = [0, 0], sizes = [16, 32], strides = [1, 1]} : vector<16x64xf32> to vector<16x32xf32>
    %20 = vector.extract_strided_slice %18 {offsets = [0, 32], sizes = [16, 16], strides = [1, 1]} : vector<16x64xf32> to vector<16x16xf32>
    %21 = vector.extract_strided_slice %18 {offsets = [0, 48], sizes = [16, 16], strides = [1, 1]} : vector<16x64xf32> to vector<16x16xf32>
    %22 = vector.extract_strided_slice %19 {offsets = [0, 0], sizes = [8, 8], strides = [1, 1]} : vector<16x32xf32> to vector<8x8xf32>
    %23 = vector.extract_strided_slice %19 {offsets = [0, 8], sizes = [8, 8], strides = [1, 1]} : vector<16x32xf32> to vector<8x8xf32>
    %24 = vector.extract_strided_slice %19 {offsets = [0, 16], sizes = [8, 8], strides = [1, 1]} : vector<16x32xf32> to vector<8x8xf32>
    %25 = vector.extract_strided_slice %19 {offsets = [0, 24], sizes = [8, 8], strides = [1, 1]} : vector<16x32xf32> to vector<8x8xf32>
    %26 = vector.extract_strided_slice %19 {offsets = [8, 0], sizes = [8, 8], strides = [1, 1]} : vector<16x32xf32> to vector<8x8xf32>
    %27 = vector.extract_strided_slice %19 {offsets = [8, 8], sizes = [8, 8], strides = [1, 1]} : vector<16x32xf32> to vector<8x8xf32>
    %28 = vector.extract_strided_slice %19 {offsets = [8, 16], sizes = [8, 8], strides = [1, 1]} : vector<16x32xf32> to vector<8x8xf32>
    %29 = vector.extract_strided_slice %19 {offsets = [8, 24], sizes = [8, 8], strides = [1, 1]} : vector<16x32xf32> to vector<8x8xf32>
    %30 = vector.shape_cast %22 : vector<8x8xf32> to vector<1x8x8xf32>
    %31 = vector.shape_cast %23 : vector<8x8xf32> to vector<1x8x8xf32>
    %32 = vector.shape_cast %24 : vector<8x8xf32> to vector<1x8x8xf32>
    %33 = vector.shape_cast %25 : vector<8x8xf32> to vector<1x8x8xf32>
    %34 = vector.shape_cast %26 : vector<8x8xf32> to vector<1x8x8xf32>
    %35 = vector.shape_cast %27 : vector<8x8xf32> to vector<1x8x8xf32>
    %36 = vector.shape_cast %28 : vector<8x8xf32> to vector<1x8x8xf32>
    %37 = vector.shape_cast %29 : vector<8x8xf32> to vector<1x8x8xf32>
    %38 = tpu.concatenate %30, %31, %32, %33, %34, %35, %36, %37 in 0 : vector<1x8x8xf32>, vector<1x8x8xf32>, vector<1x8x8xf32>, vector<1x8x8xf32>, vector<1x8x8xf32>, vector<1x8x8xf32>, vector<1x8x8xf32>, vector<1x8x8xf32> -> vector<8x8x8xf32>
    %39 = vector.extract_strided_slice %20 {offsets = [0, 0], sizes = [8, 8], strides = [1, 1]} : vector<16x16xf32> to vector<8x8xf32>
    %40 = vector.extract_strided_slice %20 {offsets = [0, 0], sizes = [8, 8], strides = [1, 1]} : vector<16x16xf32> to vector<8x8xf32>
    %41 = vector.extract_strided_slice %20 {offsets = [0, 8], sizes = [8, 8], strides = [1, 1]} : vector<16x16xf32> to vector<8x8xf32>
    %42 = vector.extract_strided_slice %20 {offsets = [0, 8], sizes = [8, 8], strides = [1, 1]} : vector<16x16xf32> to vector<8x8xf32>
    %43 = vector.extract_strided_slice %20 {offsets = [8, 0], sizes = [8, 8], strides = [1, 1]} : vector<16x16xf32> to vector<8x8xf32>
    %44 = vector.extract_strided_slice %20 {offsets = [8, 0], sizes = [8, 8], strides = [1, 1]} : vector<16x16xf32> to vector<8x8xf32>
    %45 = vector.extract_strided_slice %20 {offsets = [8, 8], sizes = [8, 8], strides = [1, 1]} : vector<16x16xf32> to vector<8x8xf32>
    %46 = vector.extract_strided_slice %20 {offsets = [8, 8], sizes = [8, 8], strides = [1, 1]} : vector<16x16xf32> to vector<8x8xf32>
    %47 = vector.shape_cast %39 : vector<8x8xf32> to vector<1x8x8xf32>
    %48 = vector.shape_cast %40 : vector<8x8xf32> to vector<1x8x8xf32>
    %49 = vector.shape_cast %41 : vector<8x8xf32> to vector<1x8x8xf32>
    %50 = vector.shape_cast %42 : vector<8x8xf32> to vector<1x8x8xf32>
    %51 = vector.shape_cast %43 : vector<8x8xf32> to vector<1x8x8xf32>
    %52 = vector.shape_cast %44 : vector<8x8xf32> to vector<1x8x8xf32>
    %53 = vector.shape_cast %45 : vector<8x8xf32> to vector<1x8x8xf32>
    %54 = vector.shape_cast %46 : vector<8x8xf32> to vector<1x8x8xf32>
    %55 = tpu.concatenate %47, %48, %49, %50, %51, %52, %53, %54 in 0 : vector<1x8x8xf32>, vector<1x8x8xf32>, vector<1x8x8xf32>, vector<1x8x8xf32>, vector<1x8x8xf32>, vector<1x8x8xf32>, vector<1x8x8xf32>, vector<1x8x8xf32> -> vector<8x8x8xf32>
    %56 = vector.extract_strided_slice %21 {offsets = [0, 0], sizes = [8, 8], strides = [1, 1]} : vector<16x16xf32> to vector<8x8xf32>
    %57 = vector.extract_strided_slice %21 {offsets = [0, 0], sizes = [8, 8], strides = [1, 1]} : vector<16x16xf32> to vector<8x8xf32>
    %58 = vector.extract_strided_slice %21 {offsets = [0, 8], sizes = [8, 8], strides = [1, 1]} : vector<16x16xf32> to vector<8x8xf32>
    %59 = vector.extract_strided_slice %21 {offsets = [0, 8], sizes = [8, 8], strides = [1, 1]} : vector<16x16xf32> to vector<8x8xf32>
    %60 = vector.extract_strided_slice %21 {offsets = [8, 0], sizes = [8, 8], strides = [1, 1]} : vector<16x16xf32> to vector<8x8xf32>
    %61 = vector.extract_strided_slice %21 {offsets = [8, 0], sizes = [8, 8], strides = [1, 1]} : vector<16x16xf32> to vector<8x8xf32>
    %62 = vector.extract_strided_slice %21 {offsets = [8, 8], sizes = [8, 8], strides = [1, 1]} : vector<16x16xf32> to vector<8x8xf32>
    %63 = vector.extract_strided_slice %21 {offsets = [8, 8], sizes = [8, 8], strides = [1, 1]} : vector<16x16xf32> to vector<8x8xf32>
    %64 = vector.shape_cast %56 : vector<8x8xf32> to vector<1x8x8xf32>
    %65 = vector.shape_cast %57 : vector<8x8xf32> to vector<1x8x8xf32>
    %66 = vector.shape_cast %58 : vector<8x8xf32> to vector<1x8x8xf32>
    %67 = vector.shape_cast %59 : vector<8x8xf32> to vector<1x8x8xf32>
    %68 = vector.shape_cast %60 : vector<8x8xf32> to vector<1x8x8xf32>
    %69 = vector.shape_cast %61 : vector<8x8xf32> to vector<1x8x8xf32>
    %70 = vector.shape_cast %62 : vector<8x8xf32> to vector<1x8x8xf32>
    %71 = vector.shape_cast %63 : vector<8x8xf32> to vector<1x8x8xf32>
    %72 = tpu.concatenate %64, %65, %66, %67, %68, %69, %70, %71 in 0 : vector<1x8x8xf32>, vector<1x8x8xf32>, vector<1x8x8xf32>, vector<1x8x8xf32>, vector<1x8x8xf32>, vector<1x8x8xf32>, vector<1x8x8xf32>, vector<1x8x8xf32> -> vector<8x8x8xf32>
    %c0_10 = arith.constant 0 : index
    %c0_11 = arith.constant 0 : index
    %73 = vector.load %arg1[%c0_10, %c0_11] : memref<8x8xf32, #tpu.memory_space<vmem>>, vector<8x8xf32>
    %74 = vector.shape_cast %73 : vector<8x8xf32> to vector<1x8x8xf32>
    %c0_12 = arith.constant 0 : index
    %c0_13 = arith.constant 0 : index
    %75 = vector.load %arg2[%c0_12, %c0_13] : memref<8x8xf32, #tpu.memory_space<vmem>>, vector<8x8xf32>
    %76 = vector.shape_cast %75 : vector<8x8xf32> to vector<1x8x8xf32>
    %77 = vector.extract_strided_slice %38 {offsets = [0, 0, 0], sizes = [8, 8, 4], strides = [1, 1, 1]} : vector<8x8x8xf32> to vector<8x8x4xf32>
    %78 = vector.extract_strided_slice %38 {offsets = [0, 0, 4], sizes = [8, 8, 4], strides = [1, 1, 1]} : vector<8x8x8xf32> to vector<8x8x4xf32>
    %cst_14 = arith.constant 0.000000e+00 : f32
    %79 = vector.broadcast %cst_14 : f32 to vector<8x8x4xf32>
    %80 = arith.subf %79, %78 : vector<8x8x4xf32>
    %81 = tpu.concatenate %80, %77 in 2 : vector<8x8x4xf32>, vector<8x8x4xf32> -> vector<8x8x8xf32>
    %82 = vector.broadcast %74 : vector<1x8x8xf32> to vector<8x8x8xf32>
    %83 = arith.mulf %38, %82 : vector<8x8x8xf32>
    %84 = vector.broadcast %76 : vector<1x8x8xf32> to vector<8x8x8xf32>
    %85 = arith.mulf %81, %84 : vector<8x8x8xf32>
    %86 = arith.addf %83, %85 : vector<8x8x8xf32>
    %87 = vector.extract_strided_slice %55 {offsets = [0, 0, 0], sizes = [8, 8, 4], strides = [1, 1, 1]} : vector<8x8x8xf32> to vector<8x8x4xf32>
    %88 = vector.extract_strided_slice %55 {offsets = [0, 0, 4], sizes = [8, 8, 4], strides = [1, 1, 1]} : vector<8x8x8xf32> to vector<8x8x4xf32>
    %cst_15 = arith.constant 0.000000e+00 : f32
    %89 = vector.broadcast %cst_15 : f32 to vector<8x8x4xf32>
    %90 = arith.subf %89, %88 : vector<8x8x4xf32>
    %91 = tpu.concatenate %90, %87 in 2 : vector<8x8x4xf32>, vector<8x8x4xf32> -> vector<8x8x8xf32>
    %92 = vector.broadcast %74 : vector<1x8x8xf32> to vector<8x8x8xf32>
    %93 = arith.mulf %55, %92 : vector<8x8x8xf32>
    %94 = vector.broadcast %76 : vector<1x8x8xf32> to vector<8x8x8xf32>
    %95 = arith.mulf %91, %94 : vector<8x8x8xf32>
    %96 = arith.addf %93, %95 : vector<8x8x8xf32>
    "tpu.trace_start"() <{level = 10 : i32, message = "nqd,nkd->nqk"}> : () -> ()
    %cst_16 = arith.constant dense<0.000000e+00> : vector<8x8x8xf32>
    %97 = tpu.matmul %86, %96, %cst_16 {dimension_numbers = #tpu.dot_dimension_numbers<[2], [2], [1], [1], [0, 0, 0, 1, 1, 1], [0], [0]>} : vector<8x8x8xf32>, vector<8x8x8xf32>, vector<8x8x8xf32> -> vector<8x8x8xf32>
    "tpu.trace_stop"() : () -> ()
    %cst_17 = arith.constant 0.353553385 : f32
    %98 = vector.broadcast %cst_17 : f32 to vector<8x8x8xf32>
    %99 = arith.mulf %97, %98 : vector<8x8x8xf32>
    %100 = tpu.iota {dimensions = array<i32: 1>} : vector<1x8x8xi32>
    %101 = tpu.iota {dimensions = array<i32: 2>} : vector<1x8x8xi32>
    %102 = arith.cmpi sge, %100, %101 : vector<1x8x8xi32>
    %cst_18 = arith.constant -1.000000e+30 : f32
    %103 = vector.shape_cast %102 : vector<1x8x8xi1> to vector<1x8x8xi1>
    %104 = vector.broadcast %103 : vector<1x8x8xi1> to vector<8x8x8xi1>
    %105 = vector.broadcast %cst_18 : f32 to vector<8x8x8xf32>
    %106 = arith.select %104, %99, %105 : vector<8x8x8xi1>, vector<8x8x8xf32>
    %cst_19 = arith.constant dense<0xFF800000> : vector<8x8xf32>
    %107 = vector.multi_reduction <maximumf>, %106, %cst_19 [2] : vector<8x8x8xf32> to vector<8x8xf32>
    %108 = vector.shape_cast %107 : vector<8x8xf32> to vector<8x8x1xf32>
    %109 = vector.broadcast %108 : vector<8x8x1xf32> to vector<8x8x8xf32>
    %110 = arith.subf %106, %109 : vector<8x8x8xf32>
    %111 = math.exp %110 : vector<8x8x8xf32>
    %cst_20 = arith.constant dense<0.000000e+00> : vector<8x8xf32>
    %112 = vector.multi_reduction <add>, %111, %cst_20 [2] : vector<8x8x8xf32> to vector<8x8xf32>
    %113 = vector.shape_cast %112 : vector<8x8xf32> to vector<8x8x1xf32>
    %114 = tpu.reciprocal %113 {approx = true} : vector<8x8x1xf32> -> vector<8x8x1xf32>
    %115 = vector.broadcast %114 : vector<8x8x1xf32> to vector<8x8x8xf32>
    %116 = arith.mulf %111, %115 : vector<8x8x8xf32>
    "tpu.trace_start"() <{level = 10 : i32, message = "nqk,nkd->nqd"}> : () -> ()
    %cst_21 = arith.constant dense<0.000000e+00> : vector<8x8x8xf32>
    %117 = tpu.matmul %116, %72, %cst_21 {dimension_numbers = #tpu.dot_dimension_numbers<[2], [1], [1], [2], [0, 0, 0, 1, 1, 2], [0], [0]>} : vector<8x8x8xf32>, vector<8x8x8xf32>, vector<8x8x8xf32> -> vector<8x8x8xf32>
    "tpu.trace_stop"() : () -> ()
    %118 = vector.extract_strided_slice %117 {offsets = [0, 0, 0], sizes = [1, 8, 8], strides = [1, 1, 1]} : vector<8x8x8xf32> to vector<1x8x8xf32>
    %119 = vector.shape_cast %118 : vector<1x8x8xf32> to vector<8x8xf32>
    %120 = vector.extract_strided_slice %117 {offsets = [1, 0, 0], sizes = [1, 8, 8], strides = [1, 1, 1]} : vector<8x8x8xf32> to vector<1x8x8xf32>
    %121 = vector.shape_cast %120 : vector<1x8x8xf32> to vector<8x8xf32>
    %122 = vector.extract_strided_slice %117 {offsets = [2, 0, 0], sizes = [1, 8, 8], strides = [1, 1, 1]} : vector<8x8x8xf32> to vector<1x8x8xf32>
    %123 = vector.shape_cast %122 : vector<1x8x8xf32> to vector<8x8xf32>
    %124 = vector.extract_strided_slice %117 {offsets = [3, 0, 0], sizes = [1, 8, 8], strides = [1, 1, 1]} : vector<8x8x8xf32> to vector<1x8x8xf32>
    %125 = vector.shape_cast %124 : vector<1x8x8xf32> to vector<8x8xf32>
    %126 = tpu.concatenate %119, %121, %123, %125 in 1 : vector<8x8xf32>, vector<8x8xf32>, vector<8x8xf32>, vector<8x8xf32> -> vector<8x32xf32>
    %127 = vector.extract_strided_slice %117 {offsets = [4, 0, 0], sizes = [1, 8, 8], strides = [1, 1, 1]} : vector<8x8x8xf32> to vector<1x8x8xf32>
    %128 = vector.shape_cast %127 : vector<1x8x8xf32> to vector<8x8xf32>
    %129 = vector.extract_strided_slice %117 {offsets = [5, 0, 0], sizes = [1, 8, 8], strides = [1, 1, 1]} : vector<8x8x8xf32> to vector<1x8x8xf32>
    %130 = vector.shape_cast %129 : vector<1x8x8xf32> to vector<8x8xf32>
    %131 = vector.extract_strided_slice %117 {offsets = [6, 0, 0], sizes = [1, 8, 8], strides = [1, 1, 1]} : vector<8x8x8xf32> to vector<1x8x8xf32>
    %132 = vector.shape_cast %131 : vector<1x8x8xf32> to vector<8x8xf32>
    %133 = vector.extract_strided_slice %117 {offsets = [7, 0, 0], sizes = [1, 8, 8], strides = [1, 1, 1]} : vector<8x8x8xf32> to vector<1x8x8xf32>
    %134 = vector.shape_cast %133 : vector<1x8x8xf32> to vector<8x8xf32>
    %135 = tpu.concatenate %128, %130, %132, %134 in 1 : vector<8x8xf32>, vector<8x8xf32>, vector<8x8xf32>, vector<8x8xf32> -> vector<8x32xf32>
    %136 = tpu.concatenate %126, %135 in 0 : vector<8x32xf32>, vector<8x32xf32> -> vector<16x32xf32>
    %c0_22 = arith.constant 0 : index
    %c0_23 = arith.constant 0 : index
    %137 = vector.load %arg6[%c0_22, %c0_23] : memref<32x32xf32, #tpu.memory_space<vmem>>, vector<32x32xf32>
    %cst_24 = arith.constant dense<0.000000e+00> : vector<16x32xf32>
    %138 = tpu.matmul %136, %137, %cst_24 {dimension_numbers = #tpu.dot_dimension_numbers<[1], [0], [0], [1], [0, 0, 1, 1], [], []>} : vector<16x32xf32>, vector<32x32xf32>, vector<16x32xf32> -> vector<16x32xf32>
    %139 = arith.addf %0, %138 : vector<16x32xf32>
    %c0_25 = arith.constant 0 : index
    %c0_26 = arith.constant 0 : index
    %140 = vector.load %arg7[%c0_25, %c0_26] : memref<1x32xf32, #tpu.memory_space<vmem>>, vector<1x32xf32>
    %141 = arith.mulf %139, %139 : vector<16x32xf32>
    %cst_27 = arith.constant dense<0.000000e+00> : vector<16xf32>
    %142 = vector.multi_reduction <add>, %141, %cst_27 [1] : vector<16x32xf32> to vector<16xf32>
    %143 = vector.shape_cast %142 : vector<16xf32> to vector<16x1xf32>
    %cst_28 = arith.constant 3.200000e+01 : f32
    %144 = vector.broadcast %cst_28 : f32 to vector<16x1xf32>
    %145 = arith.divf %143, %144 : vector<16x1xf32>
    %cst_29 = arith.constant 9.99999997E-7 : f32
    %146 = vector.broadcast %cst_29 : f32 to vector<16x1xf32>
    %147 = arith.addf %145, %146 : vector<16x1xf32>
    %148 = math.rsqrt %147 : vector<16x1xf32>
    %149 = vector.broadcast %148 : vector<16x1xf32> to vector<16x32xf32>
    %150 = arith.mulf %139, %149 : vector<16x32xf32>
    %151 = vector.broadcast %140 : vector<1x32xf32> to vector<16x32xf32>
    %152 = arith.mulf %150, %151 : vector<16x32xf32>
    %c0_30 = arith.constant 0 : index
    %c0_31 = arith.constant 0 : index
    %153 = vector.load %arg8[%c0_30, %c0_31] : memref<32x128xf32, #tpu.memory_space<vmem>>, vector<32x128xf32>
    %cst_32 = arith.constant dense<0.000000e+00> : vector<16x128xf32>
    %154 = tpu.matmul %152, %153, %cst_32 {dimension_numbers = #tpu.dot_dimension_numbers<[1], [0], [0], [1], [0, 0, 1, 1], [], []>} : vector<16x32xf32>, vector<32x128xf32>, vector<16x128xf32> -> vector<16x128xf32>
    %155 = vector.extract_strided_slice %154 {offsets = [0, 0], sizes = [16, 64], strides = [1, 1]} : vector<16x128xf32> to vector<16x64xf32>
    %156 = vector.extract_strided_slice %154 {offsets = [0, 64], sizes = [16, 64], strides = [1, 1]} : vector<16x128xf32> to vector<16x64xf32>
    %157 = arith.negf %155 : vector<16x64xf32>
    %158 = math.exp %157 : vector<16x64xf32>
    %cst_33 = arith.constant 1.000000e+00 : f32
    %159 = vector.broadcast %cst_33 : f32 to vector<16x64xf32>
    %160 = arith.addf %159, %158 : vector<16x64xf32>
    %161 = arith.divf %159, %160 : vector<16x64xf32>
    %162 = arith.mulf %155, %161 : vector<16x64xf32>
    %163 = arith.mulf %162, %156 : vector<16x64xf32>
    %c0_34 = arith.constant 0 : index
    %c0_35 = arith.constant 0 : index
    %164 = vector.load %arg9[%c0_34, %c0_35] : memref<64x32xf32, #tpu.memory_space<vmem>>, vector<64x32xf32>
    %cst_36 = arith.constant dense<0.000000e+00> : vector<16x32xf32>
    %165 = tpu.matmul %163, %164, %cst_36 {dimension_numbers = #tpu.dot_dimension_numbers<[1], [0], [0], [1], [0, 0, 1, 1], [], []>} : vector<16x64xf32>, vector<64x32xf32>, vector<16x32xf32> -> vector<16x32xf32>
    %166 = arith.addf %139, %165 : vector<16x32xf32>
    %c0_37 = arith.constant 0 : index
    %c0_38 = arith.constant 0 : index
    %167 = vector.load %arg10[%c0_37, %c0_38] : memref<16x32xf32, #tpu.memory_space<vmem>>, vector<16x32xf32>
    tpu.vector_store %arg10[%c0_37, %c0_38], %166 {strides = array<i32>} : memref<16x32xf32, #tpu.memory_space<vmem>>, vector<16x32xf32>,
    return
  }
}

</mosaic_0001>

<llo_original>
// kernel: tpu_custom_call.1
$region0: #{tpu_custom_call.1}
  #allocation0 [shape = 'u32[]', space=smem, size = 0x4, offset = 0x4, fixed_abs, tag = 'smem constant byte address 0x4 - core index']
  #allocation1 [shape = 'u32[144,128]{1,0:T(1,128)}', space=vmem, size = 0x12000, scoped, tag = 'internal scratch']
  %s0 = inlined_call_operand.hbm [shape: f32[16,32], index: 0, kind: input, shape index: {}]
  %s1 = inlined_call_operand.hbm [shape: f32[8,8], index: 1, kind: input, shape index: {}]
  %s2 = inlined_call_operand.hbm [shape: f32[8,8], index: 2, kind: input, shape index: {}]
  %s3 = inlined_call_operand.vmem [shape: f32[1,32], index: 3, kind: input, shape index: {}]
  %s4 = inlined_call_operand.vmem [shape: f32[32,64], index: 4, kind: input, shape index: {}]
  %s5 = inlined_call_operand.vmem [shape: f32[1,64], index: 5, kind: input, shape index: {}]
  %s6 = inlined_call_operand.vmem [shape: f32[32,32], index: 6, kind: input, shape index: {}]
  %s7 = inlined_call_operand.vmem [shape: f32[1,32], index: 7, kind: input, shape index: {}]
  %s8 = inlined_call_operand.vmem [shape: f32[32,128], index: 8, kind: input, shape index: {}]
  %s9 = inlined_call_operand.vmem [shape: f32[64,32], index: 9, kind: input, shape index: {}]
  %s10 = inlined_call_operand.hbm [shape: f32[16,32], index: 10, kind: output, shape index: {}]
  %s11 = sld [smem:[#allocation0]]
  $region62: #{tpu_custom_call.1} parent=0
    _
  %s13 = ssub.s32 1, %s11
  %s14 = scalar_select 0, %s13, %s11
  $region1: #{tpu_custom_call.1} parent=0
    #allocation2 [shape = 'u8[8192]{0}', space=vmem, size = 0x2000, scoped, tag = 'input window, operand 0, single buffered']
    #allocation3 [shape = 's32[1]{0}', space=sflag, size = 0x4, scoped, tag = 'scoped memory for tpu_custom_call.1']
    #allocation4 [shape = 's32[1]{0}', space=sflag, size = 0x4, scoped, tag = 'scoped memory for tpu_custom_call.1']
    #allocation5 [shape = 'u8[4096]{0}', space=vmem, size = 0x1000, scoped, tag = 'input window, operand 1, single buffered']
    #allocation6 [shape = 's32[1]{0}', space=sflag, size = 0x4, scoped, tag = 'scoped memory for tpu_custom_call.1']
    #allocation7 [shape = 'u8[4096]{0}', space=vmem, size = 0x1000, scoped, tag = 'input window, operand 2, single buffered']
    #allocation8 [shape = 'u8[8192]{0}', space=vmem, size = 0x2000, scoped, tag = 'output window, operand 0, single buffered']
    %15 = vsyncpa [#allocation3], 0
    %16 = vsyncpa [#allocation6], 0
    %17 = vsyncpa [#allocation4], 0
    // Predicated region
    $region2: #{tpu_custom_call.1} parent=1 // pred_check
      _
    $region3: #{tpu_custom_call.1} parent=1 // pred_check_branch
      %19 = sbr.rel (0) target = $region5
    $region4: #{tpu_custom_call.1} parent=1 // pred_region
      %s21 = ssub.s32 256, 256
      %22 = vsyncadd [#allocation3], %s21
      %s23 = sshll.u32 [#allocation2], 4
      %s24 = int_to_ptr.vmem [resolvable:$true] %s23
      %29 = dma.hbm_to_vmem [thread:$0]  %s0, 256, %s24, [#allocation3], 128, 128, 8
    $region5: #{tpu_custom_call.1} parent=1 // pred_fallthru
      _
    // Predicated region
    $region6: #{tpu_custom_call.1} parent=1 // pred_check
      _
    $region7: #{tpu_custom_call.1} parent=1 // pred_check_branch
      %31 = sbr.rel (0) target = $region9
    $region8: #{tpu_custom_call.1} parent=1 // pred_region
      %s33 = ssub.s32 128, 128
      %34 = vsyncadd [#allocation6], %s33
      %s36 = sshll.u32 [#allocation5], 4
      %s37 = int_to_ptr.vmem [resolvable:$true] %s36
      %39 = dma.hbm_to_vmem [thread:$0]  %s1, 128, %s37, [#allocation6]
    $region9: #{tpu_custom_call.1} parent=1 // pred_fallthru
      _
    // Predicated region
    $region10: #{tpu_custom_call.1} parent=1 // pred_check
      _
    $region11: #{tpu_custom_call.1} parent=1 // pred_check_branch
      %41 = sbr.rel (0) target = $region13
    $region12: #{tpu_custom_call.1} parent=1 // pred_region
      %s43 = ssub.s32 128, 128
      %44 = vsyncadd [#allocation6], %s43
      %s46 = sshll.u32 [#allocation7], 4
      %s47 = int_to_ptr.vmem [resolvable:$true] %s46
      %49 = dma.hbm_to_vmem [thread:$0]  %s2, 128, %s47, [#allocation6]
    $region13: #{tpu_custom_call.1} parent=1 // pred_fallthru
      _
    // Predicated region
    $region14: #{tpu_custom_call.1} parent=1 // pred_check
      _
    $region15: #{tpu_custom_call.1} parent=1 // pred_check_branch
      %51 = sbr.rel (0) target = $region17
    $region16: #{tpu_custom_call.1} parent=1 // pred_region
      _
    $region17: #{tpu_custom_call.1} parent=1 // pred_fallthru
      _
    // Predicated region
    $region18: #{tpu_custom_call.1} parent=1 // pred_check
      _
    $region19: #{tpu_custom_call.1} parent=1 // pred_check_branch
      %53 = sbr.rel (0) target = $region21
    $region20: #{tpu_custom_call.1} parent=1 // pred_region
      _
    $region21: #{tpu_custom_call.1} parent=1 // pred_fallthru
      _
    // Predicated region
    $region22: #{tpu_custom_call.1} parent=1 // pred_check
      _
    $region23: #{tpu_custom_call.1} parent=1 // pred_check_branch
      %55 = sbr.rel (0) target = $region25
    $region24: #{tpu_custom_call.1} parent=1 // pred_region
      _
    $region25: #{tpu_custom_call.1} parent=1 // pred_fallthru
      _
    // Predicated region
    $region26: #{tpu_custom_call.1} parent=1 // pred_check
      _
    $region27: #{tpu_custom_call.1} parent=1 // pred_check_branch
      %57 = sbr.rel (0) target = $region29
    $region28: #{tpu_custom_call.1} parent=1 // pred_region
      _
    $region29: #{tpu_custom_call.1} parent=1 // pred_fallthru
      _
    // Predicated region
    $region30: #{tpu_custom_call.1} parent=1 // pred_check
      _
    $region31: #{tpu_custom_call.1} parent=1 // pred_check_branch
      %59 = sbr.rel (0) target = $region33
    $region32: #{tpu_custom_call.1} parent=1 // pred_region
      _
    $region33: #{tpu_custom_call.1} parent=1 // pred_fallthru
      _
    // Predicated region
    $region34: #{tpu_custom_call.1} parent=1 // pred_check
      _
    $region35: #{tpu_custom_call.1} parent=1 // pred_check_branch
      %61 = sbr.rel (0) target = $region37
    $region36: #{tpu_custom_call.1} parent=1 // pred_region
      _
    $region37: #{tpu_custom_call.1} parent=1 // pred_fallthru
      _
    // Predicated region
    $region38: #{tpu_custom_call.1} parent=1 // pred_check
      _
    $region39: #{tpu_custom_call.1} parent=1 // pred_check_branch
      %63 = sbr.rel (0) target = $region41
    $region40: #{tpu_custom_call.1} parent=1 // pred_region
      _
    $region41: #{tpu_custom_call.1} parent=1 // pred_fallthru
      _
    // Predicated region
    $region42: #{tpu_custom_call.1} parent=1 // pred_check
      _
    $region43: #{tpu_custom_call.1} parent=1 // pred_check_branch
      %65 = sbr.rel (0) target = $region45
    $region44: #{tpu_custom_call.1} parent=1 // pred_region
      %66 = dma.done [#allocation3], 256
    $region45: #{tpu_custom_call.1} parent=1 // pred_fallthru
      _
    // Predicated region
    $region46: #{tpu_custom_call.1} parent=1 // pred_check
      _
    $region47: #{tpu_custom_call.1} parent=1 // pred_check_branch
      %68 = sbr.rel (0) target = $region49
    $region48: #{tpu_custom_call.1} parent=1 // pred_region
      %69 = dma.done [#allocation6], 128
    $region49: #{tpu_custom_call.1} parent=1 // pred_fallthru
      _
    // Predicated region
    $region50: #{tpu_custom_call.1} parent=1 // pred_check
      _
    $region51: #{tpu_custom_call.1} parent=1 // pred_check_branch
      %71 = sbr.rel (0) target = $region53
    $region52: #{tpu_custom_call.1} parent=1 // pred_region
      %72 = dma.done [#allocation6], 128
    $region53: #{tpu_custom_call.1} parent=1 // pred_fallthru
      _
    %v73 = vld [vmem:[#allocation2] sm:$0xff]
    %v74 = vld [vmem:[#allocation2 + $0x8] sm:$0xff]
    %v75 = vld [vmem:[%s3] sm:$0x1]
    %v76 = vmul.f32 %v73, %v73
    %v77 = vmul.f32 %v74, %v74
    %vm78 = vcmask 261120
    %v79 = vsel %vm78, %v76, 0.0
    %80 = vadd.xlane.f32.xlu0 %v79
    %v81 = vpop.xlane.xlu0 %80
    %v82 = vsel %vm78, %v77, 0.0
    %83 = vadd.xlane.f32.xlu0 %v82
    %v84 = vpop.xlane.xlu0 %83
    %v85 = vrcp.pop 32.0
    %v86 = vmul.f32 %v81, %v85
    %v87 = vmul.f32 %v84, %v85
    %v88 = vadd.f32 %v86, 1e-06
    %v89 = vadd.f32 %v87, 1e-06
    %v90 = vrsqrt.pop %v88
    %v91 = vrsqrt.pop %v89
    %v92 = vmul.f32 %v73, %v90
    %v93 = vmul.f32 %v74, %v91
    %v95 = vlaneseq
    %v96 = vshrl.u32 %v95, 7
    %v97 = vsub.s32 0, %v96
    %v98 = vrot.slane %v75, %v97
    %v100 = vmul.f32 %v92, %v98
    %v101 = vmul.f32 %v93, %v98
    %v102 = vld [vmem:[%s4] sm:$0xff]
    %v103 = vld [vmem:[%s4 + $0x8] sm:$0xff]
    %v104 = vld [vmem:[%s4 + $0x10] sm:$0xff]
    %v105 = vld [vmem:[%s4 + $0x18] sm:$0xff]
    %v106 = vld [vmem:[%s5] sm:$0x1]
    %v108 = vlaneseq
    %v109 = vshrl.u32 %v108, 7
    %v110 = vsub.s32 0, %v109
    %v111 = vrot.slane %v106, %v110
    %v114 = vsel %vm78, %v100, 0
    %v117 = vsel %vm78, %v101, 0
    %119 = vmatprep.subr.mxu0 0.0
    %120 = vmatpush1.msra.mxu0 0.0
    %121 = vmatprep.subr.mxu0 0.0
    %122 = vmatpush1.msra.mxu0 0.0
    %123 = vmatprep.subr.mxu0 0.0
    %124 = vmatpush1.msra.mxu0 0.0
    %125 = vmatprep.subr.mxu0 0.0
    %126 = vmatpush1.msra.mxu0 0.0
    %127 = vmatprep.subr.mxu0 0.0
    %128 = vmatpush1.msra.mxu0 0.0
    %129 = vmatprep.subr.mxu0 0.0
    %130 = vmatpush1.msra.mxu0 0.0
    %131 = vmatprep.subr.mxu0 0.0
    %132 = vmatpush1.msra.mxu0 0.0
    %133 = vmatprep.subr.mxu0 0.0
    %134 = vmatpush1.msra.mxu0 0.0
    %135 = vmatprep.subr.mxu0 0.0
    %136 = vmatpush1.msra.mxu0 0.0
    %137 = vmatprep.subr.mxu0 0.0
    %138 = vmatpush1.msra.mxu0 0.0
    %139 = vmatprep.subr.mxu0 0.0
    %140 = vmatpush1.msra.mxu0 0.0
    %141 = vmatprep.subr.mxu0 0.0
    %142 = vmatpush1.msra.mxu0 0.0
    %143 = vmatprep.subr.mxu0 0.0
    %144 = vmatpush1.msra.mxu0 %v105
    %145 = vmatprep.subr.mxu0 0.0
    %146 = vmatpush1.msra.mxu0 %v104
    %147 = vmatprep.subr.mxu0 0.0
    %148 = vmatpush1.msra.mxu0 %v103
    %149 = vmatprep.subr.mxu0 0.0
    %150 = vmatpush1.msra.mxu0 %v102
    %151 = vmatprep.subr.mxu0 0.0
    %152 = vmatpush2.msra.mxu0 0.0
    %153 = vmatprep.subr.mxu0 0.0
    %154 = vmatpush2.msra.mxu0 0.0
    %155 = vmatprep.subr.mxu0 0.0
    %156 = vmatpush2.msra.mxu0 0.0
    %157 = vmatprep.subr.mxu0 0.0
    %158 = vmatpush2.msra.mxu0 0.0
    %159 = vmatprep.subr.mxu0 0.0
    %160 = vmatpush2.msra.mxu0 0.0
    %161 = vmatprep.subr.mxu0 0.0
    %162 = vmatpush2.msra.mxu0 0.0
    %163 = vmatprep.subr.mxu0 0.0
    %164 = vmatpush2.msra.mxu0 0.0
    %165 = vmatprep.subr.mxu0 0.0
    %166 = vmatpush2.msra.mxu0 0.0
    %167 = vmatprep.subr.mxu0 0.0
    %168 = vmatpush2.msra.mxu0 0.0
    %169 = vmatprep.subr.mxu0 0.0
    %170 = vmatpush2.msra.mxu0 0.0
    %171 = vmatprep.subr.mxu0 0.0
    %172 = vmatpush2.msra.mxu0 0.0
    %173 = vmatprep.subr.mxu0 0.0
    %174 = vmatpush2.msra.mxu0 0.0
    %175 = vmatprep.subr.mxu0 0.0
    %176 = vmatpush2.msra.mxu0 0.0
    %177 = vmatprep.subr.mxu0 0.0
    %178 = vmatpush2.msra.mxu0 0.0
    %179 = vmatprep.subr.mxu0 0.0
    %180 = vmatpush2.msra.mxu0 0.0
    %181 = vmatprep.subr.mxu0 0.0
    %182 = vmatpush2.msra.mxu0 0.0
    %183 = vmatprep.mubr.f32.mxu0 0.0
    %184 = vmatmul.mubr.f32.gmra.mxu0 %v114
    %v185 = vpop.f32.mrf.mxu0
    %v186 = vadd.f32 %v111, %v185
    %v187 = vpop.f32.mrf.mxu0
    %188 = vmatprep.mubr.f32.mxu0 0.0
    %189 = vmatmul.mubr.f32.gmra.mxu0 %v117
    %v190 = vpop.f32.mrf.mxu0
    %v191 = vadd.f32 %v111, %v190
    %v192 = vpop.f32.mrf.mxu0
    %193 = vdwg.mxu0
    %195 = vrot.lane.b32.xlu0 %v186, 120
    %v196 = vpop.permute.xlu0 %195
    %198 = vrot.lane.b32.xlu0 %v186, 112
    %v199 = vpop.permute.xlu0 %198
    %201 = vrot.lane.b32.xlu0 %v186, 104
    %v202 = vpop.permute.xlu0 %201
    %205 = vrot.lane.b32.xlu0 %v191, 120
    %v206 = vpop.permute.xlu0 %205
    %208 = vrot.lane.b32.xlu0 %v191, 112
    %v209 = vpop.permute.xlu0 %208
    %211 = vrot.lane.b32.xlu0 %v191, 104
    %v212 = vpop.permute.xlu0 %211
    %v214 = vld [vmem:[#allocation5] sm:$0xff]
    %v215 = vld [vmem:[#allocation7] sm:$0xff]
    %v216 = vsub.f32 0.0, %v186
    %v217 = vsub.f32 0.0, %v196
    %v218 = vsub.f32 0.0, %v199
    %v219 = vsub.f32 0.0, %v202
    %v220 = vsub.f32 0.0, %v191
    %v221 = vsub.f32 0.0, %v206
    %v222 = vsub.f32 0.0, %v209
    %v223 = vsub.f32 0.0, %v212
    %232 = vrot.lane.b32.xlu0 %v216, 124
    %v233 = vpop.permute.xlu0 %232
    %234 = vrot.lane.b32.xlu0 %v217, 124
    %v235 = vpop.permute.xlu0 %234
    %236 = vrot.lane.b32.xlu0 %v218, 124
    %v237 = vpop.permute.xlu0 %236
    %238 = vrot.lane.b32.xlu0 %v219, 124
    %v239 = vpop.permute.xlu0 %238
    %240 = vrot.lane.b32.xlu0 %v220, 124
    %v241 = vpop.permute.xlu0 %240
    %242 = vrot.lane.b32.xlu0 %v221, 124
    %v243 = vpop.permute.xlu0 %242
    %244 = vrot.lane.b32.xlu0 %v222, 124
    %v245 = vpop.permute.xlu0 %244
    %246 = vrot.lane.b32.xlu0 %v223, 124
    %v247 = vpop.permute.xlu0 %246
    %256 = vrot.lane.b32.xlu0 %v186, 4
    %v257 = vpop.permute.xlu0 %256
    %258 = vrot.lane.b32.xlu0 %v196, 4
    %v259 = vpop.permute.xlu0 %258
    %260 = vrot.lane.b32.xlu0 %v199, 4
    %v261 = vpop.permute.xlu0 %260
    %262 = vrot.lane.b32.xlu0 %v202, 4
    %v263 = vpop.permute.xlu0 %262
    %264 = vrot.lane.b32.xlu0 %v191, 4
    %v265 = vpop.permute.xlu0 %264
    %266 = vrot.lane.b32.xlu0 %v206, 4
    %v267 = vpop.permute.xlu0 %266
    %268 = vrot.lane.b32.xlu0 %v209, 4
    %v269 = vpop.permute.xlu0 %268
    %270 = vrot.lane.b32.xlu0 %v212, 4
    %v271 = vpop.permute.xlu0 %270
    %vm280 = vcmask 31744
    %v281 = vsel %vm280, %v233, %v257
    %v282 = vsel %vm280, %v235, %v259
    %v283 = vsel %vm280, %v237, %v261
    %v284 = vsel %vm280, %v239, %v263
    %v285 = vsel %vm280, %v241, %v265
    %v286 = vsel %vm280, %v243, %v267
    %v287 = vsel %vm280, %v245, %v269
    %v288 = vsel %vm280, %v247, %v271
    %v289 = vmul.f32 %v186, %v214
    %v290 = vmul.f32 %v196, %v214
    %v291 = vmul.f32 %v199, %v214
    %v292 = vmul.f32 %v202, %v214
    %v293 = vmul.f32 %v191, %v214
    %v294 = vmul.f32 %v206, %v214
    %v295 = vmul.f32 %v209, %v214
    %v296 = vmul.f32 %v212, %v214
    %v297 = vmul.f32 %v281, %v215
    %v298 = vmul.f32 %v282, %v215
    %v299 = vmul.f32 %v283, %v215
    %v300 = vmul.f32 %v284, %v215
    %v301 = vmul.f32 %v285, %v215
    %v302 = vmul.f32 %v286, %v215
    %v303 = vmul.f32 %v287, %v215
    %v304 = vmul.f32 %v288, %v215
    %v305 = vadd.f32 %v289, %v297
    %v306 = vadd.f32 %v290, %v298
    %v307 = vadd.f32 %v291, %v299
    %v308 = vadd.f32 %v292, %v300
    %v309 = vadd.f32 %v293, %v301
    %v310 = vadd.f32 %v294, %v302
    %v311 = vadd.f32 %v295, %v303
    %v312 = vadd.f32 %v296, %v304
    %313 = vrot.lane.b32.xlu0 %v216, 92
    %v314 = vpop.permute.xlu0 %313
    %315 = vrot.lane.b32.xlu0 %v217, 92
    %v316 = vpop.permute.xlu0 %315
    %317 = vrot.lane.b32.xlu0 %v220, 92
    %v318 = vpop.permute.xlu0 %317
    %319 = vrot.lane.b32.xlu0 %v221, 92
    %v320 = vpop.permute.xlu0 %319
    %325 = vrot.lane.b32.xlu0 %v186, 100
    %v326 = vpop.permute.xlu0 %325
    %327 = vrot.lane.b32.xlu0 %v196, 100
    %v328 = vpop.permute.xlu0 %327
    %329 = vrot.lane.b32.xlu0 %v191, 100
    %v330 = vpop.permute.xlu0 %329
    %331 = vrot.lane.b32.xlu0 %v206, 100
    %v332 = vpop.permute.xlu0 %331
    %v337 = vsel %vm280, %v314, %v326
    %v338 = vsel %vm280, %v316, %v328
    %v339 = vsel %vm280, %v318, %v330
    %v340 = vsel %vm280, %v320, %v332
    %342 = vrot.lane.b32.xlu0 %v214, 32
    %v343 = vpop.permute.xlu0 %342
    %v345 = vmul.f32 %v186, %v343
    %v346 = vmul.f32 %v196, %v343
    %v347 = vmul.f32 %v191, %v343
    %v348 = vmul.f32 %v206, %v343
    %v349 = vmul.f32 %v337, %v215
    %v350 = vmul.f32 %v338, %v215
    %v351 = vmul.f32 %v339, %v215
    %v352 = vmul.f32 %v340, %v215
    %357 = vrot.lane.b32.xlu0 %v349, 32
    %v358 = vpop.permute.xlu0 %357
    %359 = vrot.lane.b32.xlu0 %v350, 32
    %v360 = vpop.permute.xlu0 %359
    %361 = vrot.lane.b32.xlu0 %v351, 32
    %v362 = vpop.permute.xlu0 %361
    %363 = vrot.lane.b32.xlu0 %v352, 32
    %v364 = vpop.permute.xlu0 %363
    %v369 = vadd.f32 %v345, %v358
    %v370 = vadd.f32 %v346, %v360
    %v371 = vadd.f32 %v347, %v362
    %v372 = vadd.f32 %v348, %v364
    %374 = vrot.lane.b32.xlu0 %v369, 96
    %v375 = vpop.permute.xlu0 %374
    %vm376 = vcmask 64512
    %v378 = vsel %vm376, %v305, 0
    %v380 = vsel %vm376, %v375, 0
    %382 = vmatprep.subr.mxu0 0.0
    %383 = vmatpush1.xpose.msra.mxu0 0.0
    %384 = vmatprep.subr.mxu0 0.0
    %385 = vmatpush1.xpose.msra.mxu0 0.0
    %386 = vmatprep.subr.mxu0 0.0
    %387 = vmatpush1.xpose.msra.mxu0 0.0
    %388 = vmatprep.subr.mxu0 0.0
    %389 = vmatpush1.xpose.msra.mxu0 0.0
    %390 = vmatprep.subr.mxu0 0.0
    %391 = vmatpush1.xpose.msra.mxu0 0.0
    %392 = vmatprep.subr.mxu0 0.0
    %393 = vmatpush1.xpose.msra.mxu0 0.0
    %394 = vmatprep.subr.mxu0 0.0
    %395 = vmatpush1.xpose.msra.mxu0 0.0
    %396 = vmatprep.subr.mxu0 0.0
    %397 = vmatpush1.xpose.msra.mxu0 0.0
    %398 = vmatprep.subr.mxu0 0.0
    %399 = vmatpush1.xpose.msra.mxu0 0.0
    %400 = vmatprep.subr.mxu0 0.0
    %401 = vmatpush1.xpose.msra.mxu0 0.0
    %402 = vmatprep.subr.mxu0 0.0
    %403 = vmatpush1.xpose.msra.mxu0 0.0
    %404 = vmatprep.subr.mxu0 0.0
    %405 = vmatpush1.xpose.msra.mxu0 0.0
    %406 = vmatprep.subr.mxu0 0.0
    %407 = vmatpush1.xpose.msra.mxu0 0.0
    %408 = vmatprep.subr.mxu0 0.0
    %409 = vmatpush1.xpose.msra.mxu0 0.0
    %410 = vmatprep.subr.mxu0 0.0
    %411 = vmatpush1.xpose.msra.mxu0 0.0
    %412 = vmatprep.subr.mxu0 0.0
    %413 = vmatpush1.xpose.msra.mxu0 %v380
    %414 = vmatprep.subr.mxu0 0.0
    %415 = vmatpush2.xpose.msra.mxu0 0.0
    %416 = vmatprep.subr.mxu0 0.0
    %417 = vmatpush2.xpose.msra.mxu0 0.0
    %418 = vmatprep.subr.mxu0 0.0
    %419 = vmatpush2.xpose.msra.mxu0 0.0
    %420 = vmatprep.subr.mxu0 0.0
    %421 = vmatpush2.xpose.msra.mxu0 0.0
    %422 = vmatprep.subr.mxu0 0.0
    %423 = vmatpush2.xpose.msra.mxu0 0.0
    %424 = vmatprep.subr.mxu0 0.0
    %425 = vmatpush2.xpose.msra.mxu0 0.0
    %426 = vmatprep.subr.mxu0 0.0
    %427 = vmatpush2.xpose.msra.mxu0 0.0
    %428 = vmatprep.subr.mxu0 0.0
    %429 = vmatpush2.xpose.msra.mxu0 0.0
    %430 = vmatprep.subr.mxu0 0.0
    %431 = vmatpush2.xpose.msra.mxu0 0.0
    %432 = vmatprep.subr.mxu0 0.0
    %433 = vmatpush2.xpose.msra.mxu0 0.0
    %434 = vmatprep.subr.mxu0 0.0
    %435 = vmatpush2.xpose.msra.mxu0 0.0
    %436 = vmatprep.subr.mxu0 0.0
    %437 = vmatpush2.xpose.msra.mxu0 0.0
    %438 = vmatprep.subr.mxu0 0.0
    %439 = vmatpush2.xpose.msra.mxu0 0.0
    %440 = vmatprep.subr.mxu0 0.0
    %441 = vmatpush2.xpose.msra.mxu0 0.0
    %442 = vmatprep.subr.mxu0 0.0
    %443 = vmatpush2.xpose.msra.mxu0 0.0
    %444 = vmatprep.subr.mxu0 0.0
    %445 = vmatpush2.xpose.msra.mxu0 0.0
    %446 = vmatprep.mubr.f32.mxu0 0.0
    %447 = vmatmul.mubr.f32.gmra.mxu0 %v378
    %v448 = vpop.f32.mrf.mxu0
    %v449 = vadd.f32 0.0, %v448
    %v450 = vpop.f32.mrf.mxu0
    %451 = vdwg.mxu0
    %v453 = vsel %vm376, %v306, 0
    %455 = vmatprep.subr.mxu0 0.0
    %456 = vmatpush1.xpose.msra.mxu0 0.0
    %457 = vmatprep.subr.mxu0 0.0
    %458 = vmatpush1.xpose.msra.mxu0 0.0
    %459 = vmatprep.subr.mxu0 0.0
    %460 = vmatpush1.xpose.msra.mxu0 0.0
    %461 = vmatprep.subr.mxu0 0.0
    %462 = vmatpush1.xpose.msra.mxu0 0.0
    %463 = vmatprep.subr.mxu0 0.0
    %464 = vmatpush1.xpose.msra.mxu0 0.0
    %465 = vmatprep.subr.mxu0 0.0
    %466 = vmatpush1.xpose.msra.mxu0 0.0
    %467 = vmatprep.subr.mxu0 0.0
    %468 = vmatpush1.xpose.msra.mxu0 0.0
    %469 = vmatprep.subr.mxu0 0.0
    %470 = vmatpush1.xpose.msra.mxu0 0.0
    %471 = vmatprep.subr.mxu0 0.0
    %472 = vmatpush1.xpose.msra.mxu0 0.0
    %473 = vmatprep.subr.mxu0 0.0
    %474 = vmatpush1.xpose.msra.mxu0 0.0
    %475 = vmatprep.subr.mxu0 0.0
    %476 = vmatpush1.xpose.msra.mxu0 0.0
    %477 = vmatprep.subr.mxu0 0.0
    %478 = vmatpush1.xpose.msra.mxu0 0.0
    %479 = vmatprep.subr.mxu0 0.0
    %480 = vmatpush1.xpose.msra.mxu0 0.0
    %481 = vmatprep.subr.mxu0 0.0
    %482 = vmatpush1.xpose.msra.mxu0 0.0
    %483 = vmatprep.subr.mxu0 0.0
    %484 = vmatpush1.xpose.msra.mxu0 0.0
    %485 = vmatprep.subr.mxu0 0.0
    %486 = vmatpush1.xpose.msra.mxu0 %v380
    %487 = vmatprep.subr.mxu0 0.0
    %488 = vmatpush2.xpose.msra.mxu0 0.0
    %489 = vmatprep.subr.mxu0 0.0
    %490 = vmatpush2.xpose.msra.mxu0 0.0
    %491 = vmatprep.subr.mxu0 0.0
    %492 = vmatpush2.xpose.msra.mxu0 0.0
    %493 = vmatprep.subr.mxu0 0.0
    %494 = vmatpush2.xpose.msra.mxu0 0.0
    %495 = vmatprep.subr.mxu0 0.0
    %496 = vmatpush2.xpose.msra.mxu0 0.0
    %497 = vmatprep.subr.mxu0 0.0
    %498 = vmatpush2.xpose.msra.mxu0 0.0
    %499 = vmatprep.subr.mxu0 0.0
    %500 = vmatpush2.xpose.msra.mxu0 0.0
    %501 = vmatprep.subr.mxu0 0.0
    %502 = vmatpush2.xpose.msra.mxu0 0.0
    %503 = vmatprep.subr.mxu0 0.0
    %504 = vmatpush2.xpose.msra.mxu0 0.0
    %505 = vmatprep.subr.mxu0 0.0
    %506 = vmatpush2.xpose.msra.mxu0 0.0
    %507 = vmatprep.subr.mxu0 0.0
    %508 = vmatpush2.xpose.msra.mxu0 0.0
    %509 = vmatprep.subr.mxu0 0.0
    %510 = vmatpush2.xpose.msra.mxu0 0.0
    %511 = vmatprep.subr.mxu0 0.0
    %512 = vmatpush2.xpose.msra.mxu0 0.0
    %513 = vmatprep.subr.mxu0 0.0
    %514 = vmatpush2.xpose.msra.mxu0 0.0
    %515 = vmatprep.subr.mxu0 0.0
    %516 = vmatpush2.xpose.msra.mxu0 0.0
    %517 = vmatprep.subr.mxu0 0.0
    %518 = vmatpush2.xpose.msra.mxu0 0.0
    %519 = vmatprep.mubr.f32.mxu0 0.0
    %520 = vmatmul.mubr.f32.gmra.mxu0 %v453
    %v521 = vpop.f32.mrf.mxu0
    %v522 = vadd.f32 0.0, %v521
    %v523 = vpop.f32.mrf.mxu0
    %524 = vdwg.mxu0
    %526 = vrot.lane.b32.xlu0 %v370, 96
    %v527 = vpop.permute.xlu0 %526
    %v529 = vsel %vm376, %v307, 0
    %v531 = vsel %vm376, %v527, 0
    %533 = vmatprep.subr.mxu0 0.0
    %534 = vmatpush1.xpose.msra.mxu0 0.0
    %535 = vmatprep.subr.mxu0 0.0
    %536 = vmatpush1.xpose.msra.mxu0 0.0
    %537 = vmatprep.subr.mxu0 0.0
    %538 = vmatpush1.xpose.msra.mxu0 0.0
    %539 = vmatprep.subr.mxu0 0.0
    %540 = vmatpush1.xpose.msra.mxu0 0.0
    %541 = vmatprep.subr.mxu0 0.0
    %542 = vmatpush1.xpose.msra.mxu0 0.0
    %543 = vmatprep.subr.mxu0 0.0
    %544 = vmatpush1.xpose.msra.mxu0 0.0
    %545 = vmatprep.subr.mxu0 0.0
    %546 = vmatpush1.xpose.msra.mxu0 0.0
    %547 = vmatprep.subr.mxu0 0.0
    %548 = vmatpush1.xpose.msra.mxu0 0.0
    %549 = vmatprep.subr.mxu0 0.0
    %550 = vmatpush1.xpose.msra.mxu0 0.0
    %551 = vmatprep.subr.mxu0 0.0
    %552 = vmatpush1.xpose.msra.mxu0 0.0
    %553 = vmatprep.subr.mxu0 0.0
    %554 = vmatpush1.xpose.msra.mxu0 0.0
    %555 = vmatprep.subr.mxu0 0.0
    %556 = vmatpush1.xpose.msra.mxu0 0.0
    %557 = vmatprep.subr.mxu0 0.0
    %558 = vmatpush1.xpose.msra.mxu0 0.0
    %559 = vmatprep.subr.mxu0 0.0
    %560 = vmatpush1.xpose.msra.mxu0 0.0
    %561 = vmatprep.subr.mxu0 0.0
    %562 = vmatpush1.xpose.msra.mxu0 0.0
    %563 = vmatprep.subr.mxu0 0.0
    %564 = vmatpush1.xpose.msra.mxu0 %v531
    %565 = vmatprep.subr.mxu0 0.0
    %566 = vmatpush2.xpose.msra.mxu0 0.0
    %567 = vmatprep.subr.mxu0 0.0
    %568 = vmatpush2.xpose.msra.mxu0 0.0
    %569 = vmatprep.subr.mxu0 0.0
    %570 = vmatpush2.xpose.msra.mxu0 0.0
    %571 = vmatprep.subr.mxu0 0.0
    %572 = vmatpush2.xpose.msra.mxu0 0.0
    %573 = vmatprep.subr.mxu0 0.0
    %574 = vmatpush2.xpose.msra.mxu0 0.0
    %575 = vmatprep.subr.mxu0 0.0
    %576 = vmatpush2.xpose.msra.mxu0 0.0
    %577 = vmatprep.subr.mxu0 0.0
    %578 = vmatpush2.xpose.msra.mxu0 0.0
    %579 = vmatprep.subr.mxu0 0.0
    %580 = vmatpush2.xpose.msra.mxu0 0.0
    %581 = vmatprep.subr.mxu0 0.0
    %582 = vmatpush2.xpose.msra.mxu0 0.0
    %583 = vmatprep.subr.mxu0 0.0
    %584 = vmatpush2.xpose.msra.mxu0 0.0
    %585 = vmatprep.subr.mxu0 0.0
    %586 = vmatpush2.xpose.msra.mxu0 0.0
    %587 = vmatprep.subr.mxu0 0.0
    %588 = vmatpush2.xpose.msra.mxu0 0.0
    %589 = vmatprep.subr.mxu0 0.0
    %590 = vmatpush2.xpose.msra.mxu0 0.0
    %591 = vmatprep.subr.mxu0 0.0
    %592 = vmatpush2.xpose.msra.mxu0 0.0
    %593 = vmatprep.subr.mxu0 0.0
    %594 = vmatpush2.xpose.msra.mxu0 0.0
    %595 = vmatprep.subr.mxu0 0.0
    %596 = vmatpush2.xpose.msra.mxu0 0.0
    %597 = vmatprep.mubr.f32.mxu0 0.0
    %598 = vmatmul.mubr.f32.gmra.mxu0 %v529
    %v599 = vpop.f32.mrf.mxu0
    %v600 = vadd.f32 0.0, %v599
    %v601 = vpop.f32.mrf.mxu0
    %602 = vdwg.mxu0
    %v604 = vsel %vm376, %v308, 0
    %606 = vmatprep.subr.mxu0 0.0
    %607 = vmatpush1.xpose.msra.mxu0 0.0
    %608 = vmatprep.subr.mxu0 0.0
    %609 = vmatpush1.xpose.msra.mxu0 0.0
    %610 = vmatprep.subr.mxu0 0.0
    %611 = vmatpush1.xpose.msra.mxu0 0.0
    %612 = vmatprep.subr.mxu0 0.0
    %613 = vmatpush1.xpose.msra.mxu0 0.0
    %614 = vmatprep.subr.mxu0 0.0
    %615 = vmatpush1.xpose.msra.mxu0 0.0
    %616 = vmatprep.subr.mxu0 0.0
    %617 = vmatpush1.xpose.msra.mxu0 0.0
    %618 = vmatprep.subr.mxu0 0.0
    %619 = vmatpush1.xpose.msra.mxu0 0.0
    %620 = vmatprep.subr.mxu0 0.0
    %621 = vmatpush1.xpose.msra.mxu0 0.0
    %622 = vmatprep.subr.mxu0 0.0
    %623 = vmatpush1.xpose.msra.mxu0 0.0
    %624 = vmatprep.subr.mxu0 0.0
    %625 = vmatpush1.xpose.msra.mxu0 0.0
    %626 = vmatprep.subr.mxu0 0.0
    %627 = vmatpush1.xpose.msra.mxu0 0.0
    %628 = vmatprep.subr.mxu0 0.0
    %629 = vmatpush1.xpose.msra.mxu0 0.0
    %630 = vmatprep.subr.mxu0 0.0
    %631 = vmatpush1.xpose.msra.mxu0 0.0
    %632 = vmatprep.subr.mxu0 0.0
    %633 = vmatpush1.xpose.msra.mxu0 0.0
    %634 = vmatprep.subr.mxu0 0.0
    %635 = vmatpush1.xpose.msra.mxu0 0.0
    %636 = vmatprep.subr.mxu0 0.0
    %637 = vmatpush1.xpose.msra.mxu0 %v531
    %638 = vmatprep.subr.mxu0 0.0
    %639 = vmatpush2.xpose.msra.mxu0 0.0
    %640 = vmatprep.subr.mxu0 0.0
    %641 = vmatpush2.xpose.msra.mxu0 0.0
    %642 = vmatprep.subr.mxu0 0.0
    %643 = vmatpush2.xpose.msra.mxu0 0.0
    %644 = vmatprep.subr.mxu0 0.0
    %645 = vmatpush2.xpose.msra.mxu0 0.0
    %646 = vmatprep.subr.mxu0 0.0
    %647 = vmatpush2.xpose.msra.mxu0 0.0
    %648 = vmatprep.subr.mxu0 0.0
    %649 = vmatpush2.xpose.msra.mxu0 0.0
    %650 = vmatprep.subr.mxu0 0.0
    %651 = vmatpush2.xpose.msra.mxu0 0.0
    %652 = vmatprep.subr.mxu0 0.0
    %653 = vmatpush2.xpose.msra.mxu0 0.0
    %654 = vmatprep.subr.mxu0 0.0
    %655 = vmatpush2.xpose.msra.mxu0 0.0
    %656 = vmatprep.subr.mxu0 0.0
    %657 = vmatpush2.xpose.msra.mxu0 0.0
    %658 = vmatprep.subr.mxu0 0.0
    %659 = vmatpush2.xpose.msra.mxu0 0.0
    %660 = vmatprep.subr.mxu0 0.0
    %661 = vmatpush2.xpose.msra.mxu0 0.0
    %662 = vmatprep.subr.mxu0 0.0
    %663 = vmatpush2.xpose.msra.mxu0 0.0
    %664 = vmatprep.subr.mxu0 0.0
    %665 = vmatpush2.xpose.msra.mxu0 0.0
    %666 = vmatprep.subr.mxu0 0.0
    %667 = vmatpush2.xpose.msra.mxu0 0.0
    %668 = vmatprep.subr.mxu0 0.0
    %669 = vmatpush2.xpose.msra.mxu0 0.0
    %670 = vmatprep.mubr.f32.mxu0 0.0
    %671 = vmatmul.mubr.f32.gmra.mxu0 %v604
    %v672 = vpop.f32.mrf.mxu0
    %v673 = vadd.f32 0.0, %v672
    %v674 = vpop.f32.mrf.mxu0
    %675 = vdwg.mxu0
    %677 = vrot.lane.b32.xlu0 %v371, 96
    %v678 = vpop.permute.xlu0 %677
    %v680 = vsel %vm376, %v309, 0
    %v682 = vsel %vm376, %v678, 0
    %684 = vmatprep.subr.mxu0 0.0
    %685 = vmatpush1.xpose.msra.mxu0 0.0
    %686 = vmatprep.subr.mxu0 0.0
    %687 = vmatpush1.xpose.msra.mxu0 0.0
    %688 = vmatprep.subr.mxu0 0.0
    %689 = vmatpush1.xpose.msra.mxu0 0.0
    %690 = vmatprep.subr.mxu0 0.0
    %691 = vmatpush1.xpose.msra.mxu0 0.0
    %692 = vmatprep.subr.mxu0 0.0
    %693 = vmatpush1.xpose.msra.mxu0 0.0
    %694 = vmatprep.subr.mxu0 0.0
    %695 = vmatpush1.xpose.msra.mxu0 0.0
    %696 = vmatprep.subr.mxu0 0.0
    %697 = vmatpush1.xpose.msra.mxu0 0.0
    %698 = vmatprep.subr.mxu0 0.0
    %699 = vmatpush1.xpose.msra.mxu0 0.0
    %700 = vmatprep.subr.mxu0 0.0
    %701 = vmatpush1.xpose.msra.mxu0 0.0
    %702 = vmatprep.subr.mxu0 0.0
    %703 = vmatpush1.xpose.msra.mxu0 0.0
    %704 = vmatprep.subr.mxu0 0.0
    %705 = vmatpush1.xpose.msra.mxu0 0.0
    %706 = vmatprep.subr.mxu0 0.0
    %707 = vmatpush1.xpose.msra.mxu0 0.0
    %708 = vmatprep.subr.mxu0 0.0
    %709 = vmatpush1.xpose.msra.mxu0 0.0
    %710 = vmatprep.subr.mxu0 0.0
    %711 = vmatpush1.xpose.msra.mxu0 0.0
    %712 = vmatprep.subr.mxu0 0.0
    %713 = vmatpush1.xpose.msra.mxu0 0.0
    %714 = vmatprep.subr.mxu0 0.0
    %715 = vmatpush1.xpose.msra.mxu0 %v682
    %716 = vmatprep.subr.mxu0 0.0
    %717 = vmatpush2.xpose.msra.mxu0 0.0
    %718 = vmatprep.subr.mxu0 0.0
    %719 = vmatpush2.xpose.msra.mxu0 0.0
    %720 = vmatprep.subr.mxu0 0.0
    %721 = vmatpush2.xpose.msra.mxu0 0.0
    %722 = vmatprep.subr.mxu0 0.0
    %723 = vmatpush2.xpose.msra.mxu0 0.0
    %724 = vmatprep.subr.mxu0 0.0
    %725 = vmatpush2.xpose.msra.mxu0 0.0
    %726 = vmatprep.subr.mxu0 0.0
    %727 = vmatpush2.xpose.msra.mxu0 0.0
    %728 = vmatprep.subr.mxu0 0.0
    %729 = vmatpush2.xpose.msra.mxu0 0.0
    %730 = vmatprep.subr.mxu0 0.0
    %731 = vmatpush2.xpose.msra.mxu0 0.0
    %732 = vmatprep.subr.mxu0 0.0
    %733 = vmatpush2.xpose.msra.mxu0 0.0
    %734 = vmatprep.subr.mxu0 0.0
    %735 = vmatpush2.xpose.msra.mxu0 0.0
    %736 = vmatprep.subr.mxu0 0.0
    %737 = vmatpush2.xpose.msra.mxu0 0.0
    %738 = vmatprep.subr.mxu0 0.0
    %739 = vmatpush2.xpose.msra.mxu0 0.0
    %740 = vmatprep.subr.mxu0 0.0
    %741 = vmatpush2.xpose.msra.mxu0 0.0
    %742 = vmatprep.subr.mxu0 0.0
    %743 = vmatpush2.xpose.msra.mxu0 0.0
    %744 = vmatprep.subr.mxu0 0.0
    %745 = vmatpush2.xpose.msra.mxu0 0.0
    %746 = vmatprep.subr.mxu0 0.0
    %747 = vmatpush2.xpose.msra.mxu0 0.0
    %748 = vmatprep.mubr.f32.mxu0 0.0
    %749 = vmatmul.mubr.f32.gmra.mxu0 %v680
    %v750 = vpop.f32.mrf.mxu0
    %v751 = vadd.f32 0.0, %v750
    %v752 = vpop.f32.mrf.mxu0
    %753 = vdwg.mxu0
    %v755 = vsel %vm376, %v310, 0
    %757 = vmatprep.subr.mxu0 0.0
    %758 = vmatpush1.xpose.msra.mxu0 0.0
    %759 = vmatprep.subr.mxu0 0.0
    %760 = vmatpush1.xpose.msra.mxu0 0.0
    %761 = vmatprep.subr.mxu0 0.0
    %762 = vmatpush1.xpose.msra.mxu0 0.0
    %763 = vmatprep.subr.mxu0 0.0
    %764 = vmatpush1.xpose.msra.mxu0 0.0
    %765 = vmatprep.subr.mxu0 0.0
    %766 = vmatpush1.xpose.msra.mxu0 0.0
    %767 = vmatprep.subr.mxu0 0.0
    %768 = vmatpush1.xpose.msra.mxu0 0.0
    %769 = vmatprep.subr.mxu0 0.0
    %770 = vmatpush1.xpose.msra.mxu0 0.0
    %771 = vmatprep.subr.mxu0 0.0
    %772 = vmatpush1.xpose.msra.mxu0 0.0
    %773 = vmatprep.subr.mxu0 0.0
    %774 = vmatpush1.xpose.msra.mxu0 0.0
    %775 = vmatprep.subr.mxu0 0.0
    %776 = vmatpush1.xpose.msra.mxu0 0.0
    %777 = vmatprep.subr.mxu0 0.0
    %778 = vmatpush1.xpose.msra.mxu0 0.0
    %779 = vmatprep.subr.mxu0 0.0
    %780 = vmatpush1.xpose.msra.mxu0 0.0
    %781 = vmatprep.subr.mxu0 0.0
    %782 = vmatpush1.xpose.msra.mxu0 0.0
    %783 = vmatprep.subr.mxu0 0.0
    %784 = vmatpush1.xpose.msra.mxu0 0.0
    %785 = vmatprep.subr.mxu0 0.0
    %786 = vmatpush1.xpose.msra.mxu0 0.0
    %787 = vmatprep.subr.mxu0 0.0
    %788 = vmatpush1.xpose.msra.mxu0 %v682
    %789 = vmatprep.subr.mxu0 0.0
    %790 = vmatpush2.xpose.msra.mxu0 0.0
    %791 = vmatprep.subr.mxu0 0.0
    %792 = vmatpush2.xpose.msra.mxu0 0.0
    %793 = vmatprep.subr.mxu0 0.0
    %794 = vmatpush2.xpose.msra.mxu0 0.0
    %795 = vmatprep.subr.mxu0 0.0
    %796 = vmatpush2.xpose.msra.mxu0 0.0
    %797 = vmatprep.subr.mxu0 0.0
    %798 = vmatpush2.xpose.msra.mxu0 0.0
    %799 = vmatprep.subr.mxu0 0.0
    %800 = vmatpush2.xpose.msra.mxu0 0.0
    %801 = vmatprep.subr.mxu0 0.0
    %802 = vmatpush2.xpose.msra.mxu0 0.0
    %803 = vmatprep.subr.mxu0 0.0
    %804 = vmatpush2.xpose.msra.mxu0 0.0
    %805 = vmatprep.subr.mxu0 0.0
    %806 = vmatpush2.xpose.msra.mxu0 0.0
    %807 = vmatprep.subr.mxu0 0.0
    %808 = vmatpush2.xpose.msra.mxu0 0.0
    %809 = vmatprep.subr.mxu0 0.0
    %810 = vmatpush2.xpose.msra.mxu0 0.0
    %811 = vmatprep.subr.mxu0 0.0
    %812 = vmatpush2.xpose.msra.mxu0 0.0
    %813 = vmatprep.subr.mxu0 0.0
    %814 = vmatpush2.xpose.msra.mxu0 0.0
    %815 = vmatprep.subr.mxu0 0.0
    %816 = vmatpush2.xpose.msra.mxu0 0.0
    %817 = vmatprep.subr.mxu0 0.0
    %818 = vmatpush2.xpose.msra.mxu0 0.0
    %819 = vmatprep.subr.mxu0 0.0
    %820 = vmatpush2.xpose.msra.mxu0 0.0
    %821 = vmatprep.mubr.f32.mxu0 0.0
    %822 = vmatmul.mubr.f32.gmra.mxu0 %v755
    %v823 = vpop.f32.mrf.mxu0
    %v824 = vadd.f32 0.0, %v823
    %v825 = vpop.f32.mrf.mxu0
    %826 = vdwg.mxu0
    %828 = vrot.lane.b32.xlu0 %v372, 96
    %v829 = vpop.permute.xlu0 %828
    %v831 = vsel %vm376, %v311, 0
    %v833 = vsel %vm376, %v829, 0
    %835 = vmatprep.subr.mxu0 0.0
    %836 = vmatpush1.xpose.msra.mxu0 0.0
    %837 = vmatprep.subr.mxu0 0.0
    %838 = vmatpush1.xpose.msra.mxu0 0.0
    %839 = vmatprep.subr.mxu0 0.0
    %840 = vmatpush1.xpose.msra.mxu0 0.0
    %841 = vmatprep.subr.mxu0 0.0
    %842 = vmatpush1.xpose.msra.mxu0 0.0
    %843 = vmatprep.subr.mxu0 0.0
    %844 = vmatpush1.xpose.msra.mxu0 0.0
    %845 = vmatprep.subr.mxu0 0.0
    %846 = vmatpush1.xpose.msra.mxu0 0.0
    %847 = vmatprep.subr.mxu0 0.0
    %848 = vmatpush1.xpose.msra.mxu0 0.0
    %849 = vmatprep.subr.mxu0 0.0
    %850 = vmatpush1.xpose.msra.mxu0 0.0
    %851 = vmatprep.subr.mxu0 0.0
    %852 = vmatpush1.xpose.msra.mxu0 0.0
    %853 = vmatprep.subr.mxu0 0.0
    %854 = vmatpush1.xpose.msra.mxu0 0.0
    %855 = vmatprep.subr.mxu0 0.0
    %856 = vmatpush1.xpose.msra.mxu0 0.0
    %857 = vmatprep.subr.mxu0 0.0
    %858 = vmatpush1.xpose.msra.mxu0 0.0
    %859 = vmatprep.subr.mxu0 0.0
    %860 = vmatpush1.xpose.msra.mxu0 0.0
    %861 = vmatprep.subr.mxu0 0.0
    %862 = vmatpush1.xpose.msra.mxu0 0.0
    %863 = vmatprep.subr.mxu0 0.0
    %864 = vmatpush1.xpose.msra.mxu0 0.0
    %865 = vmatprep.subr.mxu0 0.0
    %866 = vmatpush1.xpose.msra.mxu0 %v833
    %867 = vmatprep.subr.mxu0 0.0
    %868 = vmatpush2.xpose.msra.mxu0 0.0
    %869 = vmatprep.subr.mxu0 0.0
    %870 = vmatpush2.xpose.msra.mxu0 0.0
    %871 = vmatprep.subr.mxu0 0.0
    %872 = vmatpush2.xpose.msra.mxu0 0.0
    %873 = vmatprep.subr.mxu0 0.0
    %874 = vmatpush2.xpose.msra.mxu0 0.0
    %875 = vmatprep.subr.mxu0 0.0
    %876 = vmatpush2.xpose.msra.mxu0 0.0
    %877 = vmatprep.subr.mxu0 0.0
    %878 = vmatpush2.xpose.msra.mxu0 0.0
    %879 = vmatprep.subr.mxu0 0.0
    %880 = vmatpush2.xpose.msra.mxu0 0.0
    %881 = vmatprep.subr.mxu0 0.0
    %882 = vmatpush2.xpose.msra.mxu0 0.0
    %883 = vmatprep.subr.mxu0 0.0
    %884 = vmatpush2.xpose.msra.mxu0 0.0
    %885 = vmatprep.subr.mxu0 0.0
    %886 = vmatpush2.xpose.msra.mxu0 0.0
    %887 = vmatprep.subr.mxu0 0.0
    %888 = vmatpush2.xpose.msra.mxu0 0.0
    %889 = vmatprep.subr.mxu0 0.0
    %890 = vmatpush2.xpose.msra.mxu0 0.0
    %891 = vmatprep.subr.mxu0 0.0
    %892 = vmatpush2.xpose.msra.mxu0 0.0
    %893 = vmatprep.subr.mxu0 0.0
    %894 = vmatpush2.xpose.msra.mxu0 0.0
    %895 = vmatprep.subr.mxu0 0.0
    %896 = vmatpush2.xpose.msra.mxu0 0.0
    %897 = vmatprep.subr.mxu0 0.0
    %898 = vmatpush2.xpose.msra.mxu0 0.0
    %899 = vmatprep.mubr.f32.mxu0 0.0
    %900 = vmatmul.mubr.f32.gmra.mxu0 %v831
    %v901 = vpop.f32.mrf.mxu0
    %v902 = vadd.f32 0.0, %v901
    %v903 = vpop.f32.mrf.mxu0
    %904 = vdwg.mxu0
    %v906 = vsel %vm376, %v312, 0
    %908 = vmatprep.subr.mxu0 0.0
    %909 = vmatpush1.xpose.msra.mxu0 0.0
    %910 = vmatprep.subr.mxu0 0.0
    %911 = vmatpush1.xpose.msra.mxu0 0.0
    %912 = vmatprep.subr.mxu0 0.0
    %913 = vmatpush1.xpose.msra.mxu0 0.0
    %914 = vmatprep.subr.mxu0 0.0
    %915 = vmatpush1.xpose.msra.mxu0 0.0
    %916 = vmatprep.subr.mxu0 0.0
    %917 = vmatpush1.xpose.msra.mxu0 0.0
    %918 = vmatprep.subr.mxu0 0.0
    %919 = vmatpush1.xpose.msra.mxu0 0.0
    %920 = vmatprep.subr.mxu0 0.0
    %921 = vmatpush1.xpose.msra.mxu0 0.0
    %922 = vmatprep.subr.mxu0 0.0
    %923 = vmatpush1.xpose.msra.mxu0 0.0
    %924 = vmatprep.subr.mxu0 0.0
    %925 = vmatpush1.xpose.msra.mxu0 0.0
    %926 = vmatprep.subr.mxu0 0.0
    %927 = vmatpush1.xpose.msra.mxu0 0.0
    %928 = vmatprep.subr.mxu0 0.0
    %929 = vmatpush1.xpose.msra.mxu0 0.0
    %930 = vmatprep.subr.mxu0 0.0
    %931 = vmatpush1.xpose.msra.mxu0 0.0
    %932 = vmatprep.subr.mxu0 0.0
    %933 = vmatpush1.xpose.msra.mxu0 0.0
    %934 = vmatprep.subr.mxu0 0.0
    %935 = vmatpush1.xpose.msra.mxu0 0.0
    %936 = vmatprep.subr.mxu0 0.0
    %937 = vmatpush1.xpose.msra.mxu0 0.0
    %938 = vmatprep.subr.mxu0 0.0
    %939 = vmatpush1.xpose.msra.mxu0 %v833
    %940 = vmatprep.subr.mxu0 0.0
    %941 = vmatpush2.xpose.msra.mxu0 0.0
    %942 = vmatprep.subr.mxu0 0.0
    %943 = vmatpush2.xpose.msra.mxu0 0.0
    %944 = vmatprep.subr.mxu0 0.0
    %945 = vmatpush2.xpose.msra.mxu0 0.0
    %946 = vmatprep.subr.mxu0 0.0
    %947 = vmatpush2.xpose.msra.mxu0 0.0
    %948 = vmatprep.subr.mxu0 0.0
    %949 = vmatpush2.xpose.msra.mxu0 0.0
    %950 = vmatprep.subr.mxu0 0.0
    %951 = vmatpush2.xpose.msra.mxu0 0.0
    %952 = vmatprep.subr.mxu0 0.0
    %953 = vmatpush2.xpose.msra.mxu0 0.0
    %954 = vmatprep.subr.mxu0 0.0
    %955 = vmatpush2.xpose.msra.mxu0 0.0
    %956 = vmatprep.subr.mxu0 0.0
    %957 = vmatpush2.xpose.msra.mxu0 0.0
    %958 = vmatprep.subr.mxu0 0.0
    %959 = vmatpush2.xpose.msra.mxu0 0.0
    %960 = vmatprep.subr.mxu0 0.0
    %961 = vmatpush2.xpose.msra.mxu0 0.0
    %962 = vmatprep.subr.mxu0 0.0
    %963 = vmatpush2.xpose.msra.mxu0 0.0
    %964 = vmatprep.subr.mxu0 0.0
    %965 = vmatpush2.xpose.msra.mxu0 0.0
    %966 = vmatprep.subr.mxu0 0.0
    %967 = vmatpush2.xpose.msra.mxu0 0.0
    %968 = vmatprep.subr.mxu0 0.0
    %969 = vmatpush2.xpose.msra.mxu0 0.0
    %970 = vmatprep.subr.mxu0 0.0
    %971 = vmatpush2.xpose.msra.mxu0 0.0
    %972 = vmatprep.mubr.f32.mxu0 0.0
    %973 = vmatmul.mubr.f32.gmra.mxu0 %v906
    %v974 = vpop.f32.mrf.mxu0
    %v975 = vadd.f32 0.0, %v974
    %v976 = vpop.f32.mrf.mxu0
    %977 = vdwg.mxu0
    %v978 = vmul.f32 %v449, 0.35355338
    %v979 = vmul.f32 %v522, 0.35355338
    %v980 = vmul.f32 %v600, 0.35355338
    %v981 = vmul.f32 %v673, 0.35355338
    %v982 = vmul.f32 %v751, 0.35355338
    %v983 = vmul.f32 %v824, 0.35355338
    %v984 = vmul.f32 %v902, 0.35355338
    %v985 = vmul.f32 %v975, 0.35355338
    %v986 = vlaneseq
    %v987 = vshrl.u32 %v986, 7
    %v988 = vlaneseq
    %v989 = vand.u32 %v988, 127
    %vm990 = vcmp.ge.s32.totalorder %v987, %v989
    %v991 = vsel %vm990, 1, 0
    %vm992 = vcmp.eq.s32.totalorder %v991, 1
    %v993 = vsel %vm992, %v978, -1e+30
    %v994 = vsel %vm992, %v979, -1e+30
    %v995 = vsel %vm992, %v980, -1e+30
    %v996 = vsel %vm992, %v981, -1e+30
    %v997 = vsel %vm992, %v982, -1e+30
    %v998 = vsel %vm992, %v983, -1e+30
    %v999 = vsel %vm992, %v984, -1e+30
    %v1000 = vsel %vm992, %v985, -1e+30
    %v1001 = vsel %vm376, %v993, -inf
    %1002 = vmax.xlane.f32.xlu0 %v1001
    %v1003 = vpop.xlane.xlu0 %1002
    %v1004 = vsel %vm376, %v994, -inf
    %1005 = vmax.xlane.f32.xlu0 %v1004
    %v1006 = vpop.xlane.xlu0 %1005
    %v1007 = vsel %vm376, %v995, -inf
    %1008 = vmax.xlane.f32.xlu0 %v1007
    %v1009 = vpop.xlane.xlu0 %1008
    %v1010 = vsel %vm376, %v996, -inf
    %1011 = vmax.xlane.f32.xlu0 %v1010
    %v1012 = vpop.xlane.xlu0 %1011
    %v1013 = vsel %vm376, %v997, -inf
    %1014 = vmax.xlane.f32.xlu0 %v1013
    %v1015 = vpop.xlane.xlu0 %1014
    %v1016 = vsel %vm376, %v998, -inf
    %1017 = vmax.xlane.f32.xlu0 %v1016
    %v1018 = vpop.xlane.xlu0 %1017
    %v1019 = vsel %vm376, %v999, -inf
    %1020 = vmax.xlane.f32.xlu0 %v1019
    %v1021 = vpop.xlane.xlu0 %1020
    %v1022 = vsel %vm376, %v1000, -inf
    %1023 = vmax.xlane.f32.xlu0 %v1022
    %v1024 = vpop.xlane.xlu0 %1023
    %v1025 = vsub.f32 %v993, %v1003
    %v1026 = vsub.f32 %v994, %v1006
    %v1027 = vsub.f32 %v995, %v1009
    %v1028 = vsub.f32 %v996, %v1012
    %v1029 = vsub.f32 %v997, %v1015
    %v1030 = vsub.f32 %v998, %v1018
    %v1031 = vsub.f32 %v999, %v1021
    %v1032 = vsub.f32 %v1000, %v1024
    %v1033 = vmul.f32 %v1025, 1.442695
    %v1034 = vpow.pop %v1033
    %v1035 = vmul.f32 %v1026, 1.442695
    %v1036 = vpow.pop %v1035
    %v1037 = vmul.f32 %v1027, 1.442695
    %v1038 = vpow.pop %v1037
    %v1039 = vmul.f32 %v1028, 1.442695
    %v1040 = vpow.pop %v1039
    %v1041 = vmul.f32 %v1029, 1.442695
    %v1042 = vpow.pop %v1041
    %v1043 = vmul.f32 %v1030, 1.442695
    %v1044 = vpow.pop %v1043
    %v1045 = vmul.f32 %v1031, 1.442695
    %v1046 = vpow.pop %v1045
    %v1047 = vmul.f32 %v1032, 1.442695
    %v1048 = vpow.pop %v1047
    %v1049 = vsel %vm376, %v1034, 0.0
    %1050 = vadd.xlane.f32.xlu0 %v1049
    %v1051 = vpop.xlane.xlu0 %1050
    %v1052 = vsel %vm376, %v1036, 0.0
    %1053 = vadd.xlane.f32.xlu0 %v1052
    %v1054 = vpop.xlane.xlu0 %1053
    %v1055 = vsel %vm376, %v1038, 0.0
    %1056 = vadd.xlane.f32.xlu0 %v1055
    %v1057 = vpop.xlane.xlu0 %1056
    %v1058 = vsel %vm376, %v1040, 0.0
    %1059 = vadd.xlane.f32.xlu0 %v1058
    %v1060 = vpop.xlane.xlu0 %1059
    %v1061 = vsel %vm376, %v1042, 0.0
    %1062 = vadd.xlane.f32.xlu0 %v1061
    %v1063 = vpop.xlane.xlu0 %1062
    %v1064 = vsel %vm376, %v1044, 0.0
    %1065 = vadd.xlane.f32.xlu0 %v1064
    %v1066 = vpop.xlane.xlu0 %1065
    %v1067 = vsel %vm376, %v1046, 0.0
    %1068 = vadd.xlane.f32.xlu0 %v1067
    %v1069 = vpop.xlane.xlu0 %1068
    %v1070 = vsel %vm376, %v1048, 0.0
    %1071 = vadd.xlane.f32.xlu0 %v1070
    %v1072 = vpop.xlane.xlu0 %1071
    %v1073 = vrcp.pop %v1051
    %v1074 = vrcp.pop %v1054
    %v1075 = vrcp.pop %v1057
    %v1076 = vrcp.pop %v1060
    %v1077 = vrcp.pop %v1063
    %v1078 = vrcp.pop %v1066
    %v1079 = vrcp.pop %v1069
    %v1080 = vrcp.pop %v1072
    %v1081 = vmul.f32 %v1034, %v1073
    %v1082 = vmul.f32 %v1036, %v1074
    %v1083 = vmul.f32 %v1038, %v1075
    %v1084 = vmul.f32 %v1040, %v1076
    %v1085 = vmul.f32 %v1042, %v1077
    %v1086 = vmul.f32 %v1044, %v1078
    %v1087 = vmul.f32 %v1046, %v1079
    %v1088 = vmul.f32 %v1048, %v1080
    %1089 = vrot.lane.b32.xlu0 %v186, 80
    %v1090 = vpop.permute.xlu0 %1089
    %v1093 = vsel %vm376, %v1081, 0
    %1095 = vmatprep.subr.mxu0 0.0
    %1096 = vmatpush1.msra.mxu0 0.0
    %1097 = vmatprep.subr.mxu0 0.0
    %1098 = vmatpush1.msra.mxu0 0.0
    %1099 = vmatprep.subr.mxu0 0.0
    %1100 = vmatpush1.msra.mxu0 0.0
    %1101 = vmatprep.subr.mxu0 0.0
    %1102 = vmatpush1.msra.mxu0 0.0
    %1103 = vmatprep.subr.mxu0 0.0
    %1104 = vmatpush1.msra.mxu0 0.0
    %1105 = vmatprep.subr.mxu0 0.0
    %1106 = vmatpush1.msra.mxu0 0.0
    %1107 = vmatprep.subr.mxu0 0.0
    %1108 = vmatpush1.msra.mxu0 0.0
    %1109 = vmatprep.subr.mxu0 0.0
    %1110 = vmatpush1.msra.mxu0 0.0
    %1111 = vmatprep.subr.mxu0 0.0
    %1112 = vmatpush1.msra.mxu0 0.0
    %1113 = vmatprep.subr.mxu0 0.0
    %1114 = vmatpush1.msra.mxu0 0.0
    %1115 = vmatprep.subr.mxu0 0.0
    %1116 = vmatpush1.msra.mxu0 0.0
    %1117 = vmatprep.subr.mxu0 0.0
    %1118 = vmatpush1.msra.mxu0 0.0
    %1119 = vmatprep.subr.mxu0 0.0
    %1120 = vmatpush1.msra.mxu0 0.0
    %1121 = vmatprep.subr.mxu0 0.0
    %1122 = vmatpush1.msra.mxu0 0.0
    %1123 = vmatprep.subr.mxu0 0.0
    %1124 = vmatpush1.msra.mxu0 0.0
    %1125 = vmatprep.subr.mxu0 0.0
    %1126 = vmatpush1.msra.mxu0 %v1090
    %1127 = vmatprep.subr.mxu0 0.0
    %1128 = vmatpush2.msra.mxu0 0.0
    %1129 = vmatprep.subr.mxu0 0.0
    %1130 = vmatpush2.msra.mxu0 0.0
    %1131 = vmatprep.subr.mxu0 0.0
    %1132 = vmatpush2.msra.mxu0 0.0
    %1133 = vmatprep.subr.mxu0 0.0
    %1134 = vmatpush2.msra.mxu0 0.0
    %1135 = vmatprep.subr.mxu0 0.0
    %1136 = vmatpush2.msra.mxu0 0.0
    %1137 = vmatprep.subr.mxu0 0.0
    %1138 = vmatpush2.msra.mxu0 0.0
    %1139 = vmatprep.subr.mxu0 0.0
    %1140 = vmatpush2.msra.mxu0 0.0
    %1141 = vmatprep.subr.mxu0 0.0
    %1142 = vmatpush2.msra.mxu0 0.0
    %1143 = vmatprep.subr.mxu0 0.0
    %1144 = vmatpush2.msra.mxu0 0.0
    %1145 = vmatprep.subr.mxu0 0.0
    %1146 = vmatpush2.msra.mxu0 0.0
    %1147 = vmatprep.subr.mxu0 0.0
    %1148 = vmatpush2.msra.mxu0 0.0
    %1149 = vmatprep.subr.mxu0 0.0
    %1150 = vmatpush2.msra.mxu0 0.0
    %1151 = vmatprep.subr.mxu0 0.0
    %1152 = vmatpush2.msra.mxu0 0.0
    %1153 = vmatprep.subr.mxu0 0.0
    %1154 = vmatpush2.msra.mxu0 0.0
    %1155 = vmatprep.subr.mxu0 0.0
    %1156 = vmatpush2.msra.mxu0 0.0
    %1157 = vmatprep.subr.mxu0 0.0
    %1158 = vmatpush2.msra.mxu0 0.0
    %1159 = vmatprep.mubr.f32.mxu0 0.0
    %1160 = vmatmul.mubr.f32.gmra.mxu0 %v1093
    %v1161 = vpop.f32.mrf.mxu0
    %v1162 = vadd.f32 0.0, %v1161
    %v1163 = vpop.f32.mrf.mxu0
    %1164 = vdwg.mxu0
    %v1166 = vsel %vm376, %v1082, 0
    %1168 = vmatprep.subr.mxu0 0.0
    %1169 = vmatpush1.msra.mxu0 0.0
    %1170 = vmatprep.subr.mxu0 0.0
    %1171 = vmatpush1.msra.mxu0 0.0
    %1172 = vmatprep.subr.mxu0 0.0
    %1173 = vmatpush1.msra.mxu0 0.0
    %1174 = vmatprep.subr.mxu0 0.0
    %1175 = vmatpush1.msra.mxu0 0.0
    %1176 = vmatprep.subr.mxu0 0.0
    %1177 = vmatpush1.msra.mxu0 0.0
    %1178 = vmatprep.subr.mxu0 0.0
    %1179 = vmatpush1.msra.mxu0 0.0
    %1180 = vmatprep.subr.mxu0 0.0
    %1181 = vmatpush1.msra.mxu0 0.0
    %1182 = vmatprep.subr.mxu0 0.0
    %1183 = vmatpush1.msra.mxu0 0.0
    %1184 = vmatprep.subr.mxu0 0.0
    %1185 = vmatpush1.msra.mxu0 0.0
    %1186 = vmatprep.subr.mxu0 0.0
    %1187 = vmatpush1.msra.mxu0 0.0
    %1188 = vmatprep.subr.mxu0 0.0
    %1189 = vmatpush1.msra.mxu0 0.0
    %1190 = vmatprep.subr.mxu0 0.0
    %1191 = vmatpush1.msra.mxu0 0.0
    %1192 = vmatprep.subr.mxu0 0.0
    %1193 = vmatpush1.msra.mxu0 0.0
    %1194 = vmatprep.subr.mxu0 0.0
    %1195 = vmatpush1.msra.mxu0 0.0
    %1196 = vmatprep.subr.mxu0 0.0
    %1197 = vmatpush1.msra.mxu0 0.0
    %1198 = vmatprep.subr.mxu0 0.0
    %1199 = vmatpush1.msra.mxu0 %v1090
    %1200 = vmatprep.subr.mxu0 0.0
    %1201 = vmatpush2.msra.mxu0 0.0
    %1202 = vmatprep.subr.mxu0 0.0
    %1203 = vmatpush2.msra.mxu0 0.0
    %1204 = vmatprep.subr.mxu0 0.0
    %1205 = vmatpush2.msra.mxu0 0.0
    %1206 = vmatprep.subr.mxu0 0.0
    %1207 = vmatpush2.msra.mxu0 0.0
    %1208 = vmatprep.subr.mxu0 0.0
    %1209 = vmatpush2.msra.mxu0 0.0
    %1210 = vmatprep.subr.mxu0 0.0
    %1211 = vmatpush2.msra.mxu0 0.0
    %1212 = vmatprep.subr.mxu0 0.0
    %1213 = vmatpush2.msra.mxu0 0.0
    %1214 = vmatprep.subr.mxu0 0.0
    %1215 = vmatpush2.msra.mxu0 0.0
    %1216 = vmatprep.subr.mxu0 0.0
    %1217 = vmatpush2.msra.mxu0 0.0
    %1218 = vmatprep.subr.mxu0 0.0
    %1219 = vmatpush2.msra.mxu0 0.0
    %1220 = vmatprep.subr.mxu0 0.0
    %1221 = vmatpush2.msra.mxu0 0.0
    %1222 = vmatprep.subr.mxu0 0.0
    %1223 = vmatpush2.msra.mxu0 0.0
    %1224 = vmatprep.subr.mxu0 0.0
    %1225 = vmatpush2.msra.mxu0 0.0
    %1226 = vmatprep.subr.mxu0 0.0
    %1227 = vmatpush2.msra.mxu0 0.0
    %1228 = vmatprep.subr.mxu0 0.0
    %1229 = vmatpush2.msra.mxu0 0.0
    %1230 = vmatprep.subr.mxu0 0.0
    %1231 = vmatpush2.msra.mxu0 0.0
    %1232 = vmatprep.mubr.f32.mxu0 0.0
    %1233 = vmatmul.mubr.f32.gmra.mxu0 %v1166
    %v1234 = vpop.f32.mrf.mxu0
    %v1235 = vadd.f32 0.0, %v1234
    %v1236 = vpop.f32.mrf.mxu0
    %1237 = vdwg.mxu0
    %1238 = vrot.lane.b32.xlu0 %v196, 80
    %v1239 = vpop.permute.xlu0 %1238
    %v1242 = vsel %vm376, %v1083, 0
    %1244 = vmatprep.subr.mxu0 0.0
    %1245 = vmatpush1.msra.mxu0 0.0
    %1246 = vmatprep.subr.mxu0 0.0
    %1247 = vmatpush1.msra.mxu0 0.0
    %1248 = vmatprep.subr.mxu0 0.0
    %1249 = vmatpush1.msra.mxu0 0.0
    %1250 = vmatprep.subr.mxu0 0.0
    %1251 = vmatpush1.msra.mxu0 0.0
    %1252 = vmatprep.subr.mxu0 0.0
    %1253 = vmatpush1.msra.mxu0 0.0
    %1254 = vmatprep.subr.mxu0 0.0
    %1255 = vmatpush1.msra.mxu0 0.0
    %1256 = vmatprep.subr.mxu0 0.0
    %1257 = vmatpush1.msra.mxu0 0.0
    %1258 = vmatprep.subr.mxu0 0.0
    %1259 = vmatpush1.msra.mxu0 0.0
    %1260 = vmatprep.subr.mxu0 0.0
    %1261 = vmatpush1.msra.mxu0 0.0
    %1262 = vmatprep.subr.mxu0 0.0
    %1263 = vmatpush1.msra.mxu0 0.0
    %1264 = vmatprep.subr.mxu0 0.0
    %1265 = vmatpush1.msra.mxu0 0.0
    %1266 = vmatprep.subr.mxu0 0.0
    %1267 = vmatpush1.msra.mxu0 0.0
    %1268 = vmatprep.subr.mxu0 0.0
    %1269 = vmatpush1.msra.mxu0 0.0
    %1270 = vmatprep.subr.mxu0 0.0
    %1271 = vmatpush1.msra.mxu0 0.0
    %1272 = vmatprep.subr.mxu0 0.0
    %1273 = vmatpush1.msra.mxu0 0.0
    %1274 = vmatprep.subr.mxu0 0.0
    %1275 = vmatpush1.msra.mxu0 %v1239
    %1276 = vmatprep.subr.mxu0 0.0
    %1277 = vmatpush2.msra.mxu0 0.0
    %1278 = vmatprep.subr.mxu0 0.0
    %1279 = vmatpush2.msra.mxu0 0.0
    %1280 = vmatprep.subr.mxu0 0.0
    %1281 = vmatpush2.msra.mxu0 0.0
    %1282 = vmatprep.subr.mxu0 0.0
    %1283 = vmatpush2.msra.mxu0 0.0
    %1284 = vmatprep.subr.mxu0 0.0
    %1285 = vmatpush2.msra.mxu0 0.0
    %1286 = vmatprep.subr.mxu0 0.0
    %1287 = vmatpush2.msra.mxu0 0.0
    %1288 = vmatprep.subr.mxu0 0.0
    %1289 = vmatpush2.msra.mxu0 0.0
    %1290 = vmatprep.subr.mxu0 0.0
    %1291 = vmatpush2.msra.mxu0 0.0
    %1292 = vmatprep.subr.mxu0 0.0
    %1293 = vmatpush2.msra.mxu0 0.0
    %1294 = vmatprep.subr.mxu0 0.0
    %1295 = vmatpush2.msra.mxu0 0.0
    %1296 = vmatprep.subr.mxu0 0.0
    %1297 = vmatpush2.msra.mxu0 0.0
    %1298 = vmatprep.subr.mxu0 0.0
    %1299 = vmatpush2.msra.mxu0 0.0
    %1300 = vmatprep.subr.mxu0 0.0
    %1301 = vmatpush2.msra.mxu0 0.0
    %1302 = vmatprep.subr.mxu0 0.0
    %1303 = vmatpush2.msra.mxu0 0.0
    %1304 = vmatprep.subr.mxu0 0.0
    %1305 = vmatpush2.msra.mxu0 0.0
    %1306 = vmatprep.subr.mxu0 0.0
    %1307 = vmatpush2.msra.mxu0 0.0
    %1308 = vmatprep.mubr.f32.mxu0 0.0
    %1309 = vmatmul.mubr.f32.gmra.mxu0 %v1242
    %v1310 = vpop.f32.mrf.mxu0
    %v1311 = vadd.f32 0.0, %v1310
    %v1312 = vpop.f32.mrf.mxu0
    %1313 = vdwg.mxu0
    %v1315 = vsel %vm376, %v1084, 0
    %1317 = vmatprep.subr.mxu0 0.0
    %1318 = vmatpush1.msra.mxu0 0.0
    %1319 = vmatprep.subr.mxu0 0.0
    %1320 = vmatpush1.msra.mxu0 0.0
    %1321 = vmatprep.subr.mxu0 0.0
    %1322 = vmatpush1.msra.mxu0 0.0
    %1323 = vmatprep.subr.mxu0 0.0
    %1324 = vmatpush1.msra.mxu0 0.0
    %1325 = vmatprep.subr.mxu0 0.0
    %1326 = vmatpush1.msra.mxu0 0.0
    %1327 = vmatprep.subr.mxu0 0.0
    %1328 = vmatpush1.msra.mxu0 0.0
    %1329 = vmatprep.subr.mxu0 0.0
    %1330 = vmatpush1.msra.mxu0 0.0
    %1331 = vmatprep.subr.mxu0 0.0
    %1332 = vmatpush1.msra.mxu0 0.0
    %1333 = vmatprep.subr.mxu0 0.0
    %1334 = vmatpush1.msra.mxu0 0.0
    %1335 = vmatprep.subr.mxu0 0.0
    %1336 = vmatpush1.msra.mxu0 0.0
    %1337 = vmatprep.subr.mxu0 0.0
    %1338 = vmatpush1.msra.mxu0 0.0
    %1339 = vmatprep.subr.mxu0 0.0
    %1340 = vmatpush1.msra.mxu0 0.0
    %1341 = vmatprep.subr.mxu0 0.0
    %1342 = vmatpush1.msra.mxu0 0.0
    %1343 = vmatprep.subr.mxu0 0.0
    %1344 = vmatpush1.msra.mxu0 0.0
    %1345 = vmatprep.subr.mxu0 0.0
    %1346 = vmatpush1.msra.mxu0 0.0
    %1347 = vmatprep.subr.mxu0 0.0
    %1348 = vmatpush1.msra.mxu0 %v1239
    %1349 = vmatprep.subr.mxu0 0.0
    %1350 = vmatpush2.msra.mxu0 0.0
    %1351 = vmatprep.subr.mxu0 0.0
    %1352 = vmatpush2.msra.mxu0 0.0
    %1353 = vmatprep.subr.mxu0 0.0
    %1354 = vmatpush2.msra.mxu0 0.0
    %1355 = vmatprep.subr.mxu0 0.0
    %1356 = vmatpush2.msra.mxu0 0.0
    %1357 = vmatprep.subr.mxu0 0.0
    %1358 = vmatpush2.msra.mxu0 0.0
    %1359 = vmatprep.subr.mxu0 0.0
    %1360 = vmatpush2.msra.mxu0 0.0
    %1361 = vmatprep.subr.mxu0 0.0
    %1362 = vmatpush2.msra.mxu0 0.0
    %1363 = vmatprep.subr.mxu0 0.0
    %1364 = vmatpush2.msra.mxu0 0.0
    %1365 = vmatprep.subr.mxu0 0.0
    %1366 = vmatpush2.msra.mxu0 0.0
    %1367 = vmatprep.subr.mxu0 0.0
    %1368 = vmatpush2.msra.mxu0 0.0
    %1369 = vmatprep.subr.mxu0 0.0
    %1370 = vmatpush2.msra.mxu0 0.0
    %1371 = vmatprep.subr.mxu0 0.0
    %1372 = vmatpush2.msra.mxu0 0.0
    %1373 = vmatprep.subr.mxu0 0.0
    %1374 = vmatpush2.msra.mxu0 0.0
    %1375 = vmatprep.subr.mxu0 0.0
    %1376 = vmatpush2.msra.mxu0 0.0
    %1377 = vmatprep.subr.mxu0 0.0
    %1378 = vmatpush2.msra.mxu0 0.0
    %1379 = vmatprep.subr.mxu0 0.0
    %1380 = vmatpush2.msra.mxu0 0.0
    %1381 = vmatprep.mubr.f32.mxu0 0.0
    %1382 = vmatmul.mubr.f32.gmra.mxu0 %v1315
    %v1383 = vpop.f32.mrf.mxu0
    %v1384 = vadd.f32 0.0, %v1383
    %v1385 = vpop.f32.mrf.mxu0
    %1386 = vdwg.mxu0
    %1387 = vrot.lane.b32.xlu0 %v191, 80
    %v1388 = vpop.permute.xlu0 %1387
    %v1391 = vsel %vm376, %v1085, 0
    %1393 = vmatprep.subr.mxu0 0.0
    %1394 = vmatpush1.msra.mxu0 0.0
    %1395 = vmatprep.subr.mxu0 0.0
    %1396 = vmatpush1.msra.mxu0 0.0
    %1397 = vmatprep.subr.mxu0 0.0
    %1398 = vmatpush1.msra.mxu0 0.0
    %1399 = vmatprep.subr.mxu0 0.0
    %1400 = vmatpush1.msra.mxu0 0.0
    %1401 = vmatprep.subr.mxu0 0.0
    %1402 = vmatpush1.msra.mxu0 0.0
    %1403 = vmatprep.subr.mxu0 0.0
    %1404 = vmatpush1.msra.mxu0 0.0
    %1405 = vmatprep.subr.mxu0 0.0
    %1406 = vmatpush1.msra.mxu0 0.0
    %1407 = vmatprep.subr.mxu0 0.0
    %1408 = vmatpush1.msra.mxu0 0.0
    %1409 = vmatprep.subr.mxu0 0.0
    %1410 = vmatpush1.msra.mxu0 0.0
    %1411 = vmatprep.subr.mxu0 0.0
    %1412 = vmatpush1.msra.mxu0 0.0
    %1413 = vmatprep.subr.mxu0 0.0
    %1414 = vmatpush1.msra.mxu0 0.0
    %1415 = vmatprep.subr.mxu0 0.0
    %1416 = vmatpush1.msra.mxu0 0.0
    %1417 = vmatprep.subr.mxu0 0.0
    %1418 = vmatpush1.msra.mxu0 0.0
    %1419 = vmatprep.subr.mxu0 0.0
    %1420 = vmatpush1.msra.mxu0 0.0
    %1421 = vmatprep.subr.mxu0 0.0
    %1422 = vmatpush1.msra.mxu0 0.0
    %1423 = vmatprep.subr.mxu0 0.0
    %1424 = vmatpush1.msra.mxu0 %v1388
    %1425 = vmatprep.subr.mxu0 0.0
    %1426 = vmatpush2.msra.mxu0 0.0
    %1427 = vmatprep.subr.mxu0 0.0
    %1428 = vmatpush2.msra.mxu0 0.0
    %1429 = vmatprep.subr.mxu0 0.0
    %1430 = vmatpush2.msra.mxu0 0.0
    %1431 = vmatprep.subr.mxu0 0.0
    %1432 = vmatpush2.msra.mxu0 0.0
    %1433 = vmatprep.subr.mxu0 0.0
    %1434 = vmatpush2.msra.mxu0 0.0
    %1435 = vmatprep.subr.mxu0 0.0
    %1436 = vmatpush2.msra.mxu0 0.0
    %1437 = vmatprep.subr.mxu0 0.0
    %1438 = vmatpush2.msra.mxu0 0.0
    %1439 = vmatprep.subr.mxu0 0.0
    %1440 = vmatpush2.msra.mxu0 0.0
    %1441 = vmatprep.subr.mxu0 0.0
    %1442 = vmatpush2.msra.mxu0 0.0
    %1443 = vmatprep.subr.mxu0 0.0
    %1444 = vmatpush2.msra.mxu0 0.0
    %1445 = vmatprep.subr.mxu0 0.0
    %1446 = vmatpush2.msra.mxu0 0.0
    %1447 = vmatprep.subr.mxu0 0.0
    %1448 = vmatpush2.msra.mxu0 0.0
    %1449 = vmatprep.subr.mxu0 0.0
    %1450 = vmatpush2.msra.mxu0 0.0
    %1451 = vmatprep.subr.mxu0 0.0
    %1452 = vmatpush2.msra.mxu0 0.0
    %1453 = vmatprep.subr.mxu0 0.0
    %1454 = vmatpush2.msra.mxu0 0.0
    %1455 = vmatprep.subr.mxu0 0.0
    %1456 = vmatpush2.msra.mxu0 0.0
    %1457 = vmatprep.mubr.f32.mxu0 0.0
    %1458 = vmatmul.mubr.f32.gmra.mxu0 %v1391
    %v1459 = vpop.f32.mrf.mxu0
    %v1460 = vadd.f32 0.0, %v1459
    %v1461 = vpop.f32.mrf.mxu0
    %1462 = vdwg.mxu0
    %v1464 = vsel %vm376, %v1086, 0
    %1466 = vmatprep.subr.mxu0 0.0
    %1467 = vmatpush1.msra.mxu0 0.0
    %1468 = vmatprep.subr.mxu0 0.0
    %1469 = vmatpush1.msra.mxu0 0.0
    %1470 = vmatprep.subr.mxu0 0.0
    %1471 = vmatpush1.msra.mxu0 0.0
    %1472 = vmatprep.subr.mxu0 0.0
    %1473 = vmatpush1.msra.mxu0 0.0
    %1474 = vmatprep.subr.mxu0 0.0
    %1475 = vmatpush1.msra.mxu0 0.0
    %1476 = vmatprep.subr.mxu0 0.0
    %1477 = vmatpush1.msra.mxu0 0.0
    %1478 = vmatprep.subr.mxu0 0.0
    %1479 = vmatpush1.msra.mxu0 0.0
    %1480 = vmatprep.subr.mxu0 0.0
    %1481 = vmatpush1.msra.mxu0 0.0
    %1482 = vmatprep.subr.mxu0 0.0
    %1483 = vmatpush1.msra.mxu0 0.0
    %1484 = vmatprep.subr.mxu0 0.0
    %1485 = vmatpush1.msra.mxu0 0.0
    %1486 = vmatprep.subr.mxu0 0.0
    %1487 = vmatpush1.msra.mxu0 0.0
    %1488 = vmatprep.subr.mxu0 0.0
    %1489 = vmatpush1.msra.mxu0 0.0
    %1490 = vmatprep.subr.mxu0 0.0
    %1491 = vmatpush1.msra.mxu0 0.0
    %1492 = vmatprep.subr.mxu0 0.0
    %1493 = vmatpush1.msra.mxu0 0.0
    %1494 = vmatprep.subr.mxu0 0.0
    %1495 = vmatpush1.msra.mxu0 0.0
    %1496 = vmatprep.subr.mxu0 0.0
    %1497 = vmatpush1.msra.mxu0 %v1388
    %1498 = vmatprep.subr.mxu0 0.0
    %1499 = vmatpush2.msra.mxu0 0.0
    %1500 = vmatprep.subr.mxu0 0.0
    %1501 = vmatpush2.msra.mxu0 0.0
    %1502 = vmatprep.subr.mxu0 0.0
    %1503 = vmatpush2.msra.mxu0 0.0
    %1504 = vmatprep.subr.mxu0 0.0
    %1505 = vmatpush2.msra.mxu0 0.0
    %1506 = vmatprep.subr.mxu0 0.0
    %1507 = vmatpush2.msra.mxu0 0.0
    %1508 = vmatprep.subr.mxu0 0.0
    %1509 = vmatpush2.msra.mxu0 0.0
    %1510 = vmatprep.subr.mxu0 0.0
    %1511 = vmatpush2.msra.mxu0 0.0
    %1512 = vmatprep.subr.mxu0 0.0
    %1513 = vmatpush2.msra.mxu0 0.0
    %1514 = vmatprep.subr.mxu0 0.0
    %1515 = vmatpush2.msra.mxu0 0.0
    %1516 = vmatprep.subr.mxu0 0.0
    %1517 = vmatpush2.msra.mxu0 0.0
    %1518 = vmatprep.subr.mxu0 0.0
    %1519 = vmatpush2.msra.mxu0 0.0
    %1520 = vmatprep.subr.mxu0 0.0
    %1521 = vmatpush2.msra.mxu0 0.0
    %1522 = vmatprep.subr.mxu0 0.0
    %1523 = vmatpush2.msra.mxu0 0.0
    %1524 = vmatprep.subr.mxu0 0.0
    %1525 = vmatpush2.msra.mxu0 0.0
    %1526 = vmatprep.subr.mxu0 0.0
    %1527 = vmatpush2.msra.mxu0 0.0
    %1528 = vmatprep.subr.mxu0 0.0
    %1529 = vmatpush2.msra.mxu0 0.0
    %1530 = vmatprep.mubr.f32.mxu0 0.0
    %1531 = vmatmul.mubr.f32.gmra.mxu0 %v1464
    %v1532 = vpop.f32.mrf.mxu0
    %v1533 = vadd.f32 0.0, %v1532
    %v1534 = vpop.f32.mrf.mxu0
    %1535 = vdwg.mxu0
    %1536 = vrot.lane.b32.xlu0 %v206, 80
    %v1537 = vpop.permute.xlu0 %1536
    %v1540 = vsel %vm376, %v1087, 0
    %1542 = vmatprep.subr.mxu0 0.0
    %1543 = vmatpush1.msra.mxu0 0.0
    %1544 = vmatprep.subr.mxu0 0.0
    %1545 = vmatpush1.msra.mxu0 0.0
    %1546 = vmatprep.subr.mxu0 0.0
    %1547 = vmatpush1.msra.mxu0 0.0
    %1548 = vmatprep.subr.mxu0 0.0
    %1549 = vmatpush1.msra.mxu0 0.0
    %1550 = vmatprep.subr.mxu0 0.0
    %1551 = vmatpush1.msra.mxu0 0.0
    %1552 = vmatprep.subr.mxu0 0.0
    %1553 = vmatpush1.msra.mxu0 0.0
    %1554 = vmatprep.subr.mxu0 0.0
    %1555 = vmatpush1.msra.mxu0 0.0
    %1556 = vmatprep.subr.mxu0 0.0
    %1557 = vmatpush1.msra.mxu0 0.0
    %1558 = vmatprep.subr.mxu0 0.0
    %1559 = vmatpush1.msra.mxu0 0.0
    %1560 = vmatprep.subr.mxu0 0.0
    %1561 = vmatpush1.msra.mxu0 0.0
    %1562 = vmatprep.subr.mxu0 0.0
    %1563 = vmatpush1.msra.mxu0 0.0
    %1564 = vmatprep.subr.mxu0 0.0
    %1565 = vmatpush1.msra.mxu0 0.0
    %1566 = vmatprep.subr.mxu0 0.0
    %1567 = vmatpush1.msra.mxu0 0.0
    %1568 = vmatprep.subr.mxu0 0.0
    %1569 = vmatpush1.msra.mxu0 0.0
    %1570 = vmatprep.subr.mxu0 0.0
    %1571 = vmatpush1.msra.mxu0 0.0
    %1572 = vmatprep.subr.mxu0 0.0
    %1573 = vmatpush1.msra.mxu0 %v1537
    %1574 = vmatprep.subr.mxu0 0.0
    %1575 = vmatpush2.msra.mxu0 0.0
    %1576 = vmatprep.subr.mxu0 0.0
    %1577 = vmatpush2.msra.mxu0 0.0
    %1578 = vmatprep.subr.mxu0 0.0
    %1579 = vmatpush2.msra.mxu0 0.0
    %1580 = vmatprep.subr.mxu0 0.0
    %1581 = vmatpush2.msra.mxu0 0.0
    %1582 = vmatprep.subr.mxu0 0.0
    %1583 = vmatpush2.msra.mxu0 0.0
    %1584 = vmatprep.subr.mxu0 0.0
    %1585 = vmatpush2.msra.mxu0 0.0
    %1586 = vmatprep.subr.mxu0 0.0
    %1587 = vmatpush2.msra.mxu0 0.0
    %1588 = vmatprep.subr.mxu0 0.0
    %1589 = vmatpush2.msra.mxu0 0.0
    %1590 = vmatprep.subr.mxu0 0.0
    %1591 = vmatpush2.msra.mxu0 0.0
    %1592 = vmatprep.subr.mxu0 0.0
    %1593 = vmatpush2.msra.mxu0 0.0
    %1594 = vmatprep.subr.mxu0 0.0
    %1595 = vmatpush2.msra.mxu0 0.0
    %1596 = vmatprep.subr.mxu0 0.0
    %1597 = vmatpush2.msra.mxu0 0.0
    %1598 = vmatprep.subr.mxu0 0.0
    %1599 = vmatpush2.msra.mxu0 0.0
    %1600 = vmatprep.subr.mxu0 0.0
    %1601 = vmatpush2.msra.mxu0 0.0
    %1602 = vmatprep.subr.mxu0 0.0
    %1603 = vmatpush2.msra.mxu0 0.0
    %1604 = vmatprep.subr.mxu0 0.0
    %1605 = vmatpush2.msra.mxu0 0.0
    %1606 = vmatprep.mubr.f32.mxu0 0.0
    %1607 = vmatmul.mubr.f32.gmra.mxu0 %v1540
    %v1608 = vpop.f32.mrf.mxu0
    %v1609 = vadd.f32 0.0, %v1608
    %v1610 = vpop.f32.mrf.mxu0
    %1611 = vdwg.mxu0
    %v1613 = vsel %vm376, %v1088, 0
    %1615 = vmatprep.subr.mxu0 0.0
    %1616 = vmatpush1.msra.mxu0 0.0
    %1617 = vmatprep.subr.mxu0 0.0
    %1618 = vmatpush1.msra.mxu0 0.0
    %1619 = vmatprep.subr.mxu0 0.0
    %1620 = vmatpush1.msra.mxu0 0.0
    %1621 = vmatprep.subr.mxu0 0.0
    %1622 = vmatpush1.msra.mxu0 0.0
    %1623 = vmatprep.subr.mxu0 0.0
    %1624 = vmatpush1.msra.mxu0 0.0
    %1625 = vmatprep.subr.mxu0 0.0
    %1626 = vmatpush1.msra.mxu0 0.0
    %1627 = vmatprep.subr.mxu0 0.0
    %1628 = vmatpush1.msra.mxu0 0.0
    %1629 = vmatprep.subr.mxu0 0.0
    %1630 = vmatpush1.msra.mxu0 0.0
    %1631 = vmatprep.subr.mxu0 0.0
    %1632 = vmatpush1.msra.mxu0 0.0
    %1633 = vmatprep.subr.mxu0 0.0
    %1634 = vmatpush1.msra.mxu0 0.0
    %1635 = vmatprep.subr.mxu0 0.0
    %1636 = vmatpush1.msra.mxu0 0.0
    %1637 = vmatprep.subr.mxu0 0.0
    %1638 = vmatpush1.msra.mxu0 0.0
    %1639 = vmatprep.subr.mxu0 0.0
    %1640 = vmatpush1.msra.mxu0 0.0
    %1641 = vmatprep.subr.mxu0 0.0
    %1642 = vmatpush1.msra.mxu0 0.0
    %1643 = vmatprep.subr.mxu0 0.0
    %1644 = vmatpush1.msra.mxu0 0.0
    %1645 = vmatprep.subr.mxu0 0.0
    %1646 = vmatpush1.msra.mxu0 %v1537
    %1647 = vmatprep.subr.mxu0 0.0
    %1648 = vmatpush2.msra.mxu0 0.0
    %1649 = vmatprep.subr.mxu0 0.0
    %1650 = vmatpush2.msra.mxu0 0.0
    %1651 = vmatprep.subr.mxu0 0.0
    %1652 = vmatpush2.msra.mxu0 0.0
    %1653 = vmatprep.subr.mxu0 0.0
    %1654 = vmatpush2.msra.mxu0 0.0
    %1655 = vmatprep.subr.mxu0 0.0
    %1656 = vmatpush2.msra.mxu0 0.0
    %1657 = vmatprep.subr.mxu0 0.0
    %1658 = vmatpush2.msra.mxu0 0.0
    %1659 = vmatprep.subr.mxu0 0.0
    %1660 = vmatpush2.msra.mxu0 0.0
    %1661 = vmatprep.subr.mxu0 0.0
    %1662 = vmatpush2.msra.mxu0 0.0
    %1663 = vmatprep.subr.mxu0 0.0
    %1664 = vmatpush2.msra.mxu0 0.0
    %1665 = vmatprep.subr.mxu0 0.0
    %1666 = vmatpush2.msra.mxu0 0.0
    %1667 = vmatprep.subr.mxu0 0.0
    %1668 = vmatpush2.msra.mxu0 0.0
    %1669 = vmatprep.subr.mxu0 0.0
    %1670 = vmatpush2.msra.mxu0 0.0
    %1671 = vmatprep.subr.mxu0 0.0
    %1672 = vmatpush2.msra.mxu0 0.0
    %1673 = vmatprep.subr.mxu0 0.0
    %1674 = vmatpush2.msra.mxu0 0.0
    %1675 = vmatprep.subr.mxu0 0.0
    %1676 = vmatpush2.msra.mxu0 0.0
    %1677 = vmatprep.subr.mxu0 0.0
    %1678 = vmatpush2.msra.mxu0 0.0
    %1679 = vmatprep.mubr.f32.mxu0 0.0
    %1680 = vmatmul.mubr.f32.gmra.mxu0 %v1613
    %v1681 = vpop.f32.mrf.mxu0
    %v1682 = vadd.f32 0.0, %v1681
    %v1683 = vpop.f32.mrf.mxu0
    %1684 = vdwg.mxu0
    %1686 = vrot.lane.b32.xlu0 %v1235, 8
    %v1687 = vpop.permute.xlu0 %1686
    %1690 = vrot.lane.b32.xlu0 %v1311, 16
    %v1691 = vpop.permute.xlu0 %1690
    %1694 = vrot.lane.b32.xlu0 %v1384, 24
    %v1695 = vpop.permute.xlu0 %1694
    %v1697 = vsel %vm376, %v1162, %v1687
    %vm1698 = vcmask 130048
    %v1699 = vsel %vm1698, %v1697, %v1691
    %vm1700 = vcmask 195584
    %v1701 = vsel %vm1700, %v1699, %v1695
    %1703 = vrot.lane.b32.xlu0 %v1533, 8
    %v1704 = vpop.permute.xlu0 %1703
    %1707 = vrot.lane.b32.xlu0 %v1609, 16
    %v1708 = vpop.permute.xlu0 %1707
    %1711 = vrot.lane.b32.xlu0 %v1682, 24
    %v1712 = vpop.permute.xlu0 %1711
    %v1714 = vsel %vm376, %v1460, %v1704
    %v1715 = vsel %vm1698, %v1714, %v1708
    %v1716 = vsel %vm1700, %v1715, %v1712
    %v1717 = vld [vmem:[%s6] sm:$0xff]
    %v1718 = vld [vmem:[%s6 + $0x8] sm:$0xff]
    %v1719 = vld [vmem:[%s6 + $0x10] sm:$0xff]
    %v1720 = vld [vmem:[%s6 + $0x18] sm:$0xff]
    %v1722 = vsel %vm78, %v1701, 0
    %v1725 = vsel %vm78, %v1716, 0
    %1727 = vmatprep.subr.mxu0 0.0
    %1728 = vmatpush1.msra.mxu0 0.0
    %1729 = vmatprep.subr.mxu0 0.0
    %1730 = vmatpush1.msra.mxu0 0.0
    %1731 = vmatprep.subr.mxu0 0.0
    %1732 = vmatpush1.msra.mxu0 0.0
    %1733 = vmatprep.subr.mxu0 0.0
    %1734 = vmatpush1.msra.mxu0 0.0
    %1735 = vmatprep.subr.mxu0 0.0
    %1736 = vmatpush1.msra.mxu0 0.0
    %1737 = vmatprep.subr.mxu0 0.0
    %1738 = vmatpush1.msra.mxu0 0.0
    %1739 = vmatprep.subr.mxu0 0.0
    %1740 = vmatpush1.msra.mxu0 0.0
    %1741 = vmatprep.subr.mxu0 0.0
    %1742 = vmatpush1.msra.mxu0 0.0
    %1743 = vmatprep.subr.mxu0 0.0
    %1744 = vmatpush1.msra.mxu0 0.0
    %1745 = vmatprep.subr.mxu0 0.0
    %1746 = vmatpush1.msra.mxu0 0.0
    %1747 = vmatprep.subr.mxu0 0.0
    %1748 = vmatpush1.msra.mxu0 0.0
    %1749 = vmatprep.subr.mxu0 0.0
    %1750 = vmatpush1.msra.mxu0 0.0
    %1751 = vmatprep.subr.mxu0 0.0
    %1752 = vmatpush1.msra.mxu0 %v1720
    %1753 = vmatprep.subr.mxu0 0.0
    %1754 = vmatpush1.msra.mxu0 %v1719
    %1755 = vmatprep.subr.mxu0 0.0
    %1756 = vmatpush1.msra.mxu0 %v1718
    %1757 = vmatprep.subr.mxu0 0.0
    %1758 = vmatpush1.msra.mxu0 %v1717
    %1759 = vmatprep.subr.mxu0 0.0
    %1760 = vmatpush2.msra.mxu0 0.0
    %1761 = vmatprep.subr.mxu0 0.0
    %1762 = vmatpush2.msra.mxu0 0.0
    %1763 = vmatprep.subr.mxu0 0.0
    %1764 = vmatpush2.msra.mxu0 0.0
    %1765 = vmatprep.subr.mxu0 0.0
    %1766 = vmatpush2.msra.mxu0 0.0
    %1767 = vmatprep.subr.mxu0 0.0
    %1768 = vmatpush2.msra.mxu0 0.0
    %1769 = vmatprep.subr.mxu0 0.0
    %1770 = vmatpush2.msra.mxu0 0.0
    %1771 = vmatprep.subr.mxu0 0.0
    %1772 = vmatpush2.msra.mxu0 0.0
    %1773 = vmatprep.subr.mxu0 0.0
    %1774 = vmatpush2.msra.mxu0 0.0
    %1775 = vmatprep.subr.mxu0 0.0
    %1776 = vmatpush2.msra.mxu0 0.0
    %1777 = vmatprep.subr.mxu0 0.0
    %1778 = vmatpush2.msra.mxu0 0.0
    %1779 = vmatprep.subr.mxu0 0.0
    %1780 = vmatpush2.msra.mxu0 0.0
    %1781 = vmatprep.subr.mxu0 0.0
    %1782 = vmatpush2.msra.mxu0 0.0
    %1783 = vmatprep.subr.mxu0 0.0
    %1784 = vmatpush2.msra.mxu0 0.0
    %1785 = vmatprep.subr.mxu0 0.0
    %1786 = vmatpush2.msra.mxu0 0.0
    %1787 = vmatprep.subr.mxu0 0.0
    %1788 = vmatpush2.msra.mxu0 0.0
    %1789 = vmatprep.subr.mxu0 0.0
    %1790 = vmatpush2.msra.mxu0 0.0
    %1791 = vmatprep.mubr.f32.mxu0 0.0
    %1792 = vmatmul.mubr.f32.gmra.mxu0 %v1722
    %v1793 = vpop.f32.mrf.mxu0
    %v1794 = vadd.f32 0.0, %v1793
    %v1795 = vpop.f32.mrf.mxu0
    %1796 = vmatprep.mubr.f32.mxu0 0.0
    %1797 = vmatmul.mubr.f32.gmra.mxu0 %v1725
    %v1798 = vpop.f32.mrf.mxu0
    %v1799 = vadd.f32 0.0, %v1798
    %v1800 = vpop.f32.mrf.mxu0
    %1801 = vdwg.mxu0
    %v1802 = vadd.f32 %v73, %v1794
    %v1803 = vadd.f32 %v74, %v1799
    %v1804 = vld [vmem:[%s7] sm:$0x1]
    %v1805 = vmul.f32 %v1802, %v1802
    %v1806 = vmul.f32 %v1803, %v1803
    %v1807 = vsel %vm78, %v1805, 0.0
    %1808 = vadd.xlane.f32.xlu0 %v1807
    %v1809 = vpop.xlane.xlu0 %1808
    %v1810 = vsel %vm78, %v1806, 0.0
    %1811 = vadd.xlane.f32.xlu0 %v1810
    %v1812 = vpop.xlane.xlu0 %1811
    %v1813 = vmul.f32 %v1809, %v85
    %v1814 = vmul.f32 %v1812, %v85
    %v1815 = vadd.f32 %v1813, 1e-06
    %v1816 = vadd.f32 %v1814, 1e-06
    %v1817 = vrsqrt.pop %v1815
    %v1818 = vrsqrt.pop %v1816
    %v1819 = vmul.f32 %v1802, %v1817
    %v1820 = vmul.f32 %v1803, %v1818
    %v1822 = vlaneseq
    %v1823 = vshrl.u32 %v1822, 7
    %v1824 = vsub.s32 0, %v1823
    %v1825 = vrot.slane %v1804, %v1824
    %v1827 = vmul.f32 %v1819, %v1825
    %v1828 = vmul.f32 %v1820, %v1825
    %v1829 = vld [vmem:[%s8] sm:$0xff]
    %v1830 = vld [vmem:[%s8 + $0x8] sm:$0xff]
    %v1831 = vld [vmem:[%s8 + $0x10] sm:$0xff]
    %v1832 = vld [vmem:[%s8 + $0x18] sm:$0xff]
    %v1834 = vsel %vm78, %v1827, 0
    %v1837 = vsel %vm78, %v1828, 0
    %1839 = vmatprep.subr.mxu0 0.0
    %1840 = vmatpush1.msra.mxu0 0.0
    %1841 = vmatprep.subr.mxu0 0.0
    %1842 = vmatpush1.msra.mxu0 0.0
    %1843 = vmatprep.subr.mxu0 0.0
    %1844 = vmatpush1.msra.mxu0 0.0
    %1845 = vmatprep.subr.mxu0 0.0
    %1846 = vmatpush1.msra.mxu0 0.0
    %1847 = vmatprep.subr.mxu0 0.0
    %1848 = vmatpush1.msra.mxu0 0.0
    %1849 = vmatprep.subr.mxu0 0.0
    %1850 = vmatpush1.msra.mxu0 0.0
    %1851 = vmatprep.subr.mxu0 0.0
    %1852 = vmatpush1.msra.mxu0 0.0
    %1853 = vmatprep.subr.mxu0 0.0
    %1854 = vmatpush1.msra.mxu0 0.0
    %1855 = vmatprep.subr.mxu0 0.0
    %1856 = vmatpush1.msra.mxu0 0.0
    %1857 = vmatprep.subr.mxu0 0.0
    %1858 = vmatpush1.msra.mxu0 0.0
    %1859 = vmatprep.subr.mxu0 0.0
    %1860 = vmatpush1.msra.mxu0 0.0
    %1861 = vmatprep.subr.mxu0 0.0
    %1862 = vmatpush1.msra.mxu0 0.0
    %1863 = vmatprep.subr.mxu0 0.0
    %1864 = vmatpush1.msra.mxu0 %v1832
    %1865 = vmatprep.subr.mxu0 0.0
    %1866 = vmatpush1.msra.mxu0 %v1831
    %1867 = vmatprep.subr.mxu0 0.0
    %1868 = vmatpush1.msra.mxu0 %v1830
    %1869 = vmatprep.subr.mxu0 0.0
    %1870 = vmatpush1.msra.mxu0 %v1829
    %1871 = vmatprep.subr.mxu0 0.0
    %1872 = vmatpush2.msra.mxu0 0.0
    %1873 = vmatprep.subr.mxu0 0.0
    %1874 = vmatpush2.msra.mxu0 0.0
    %1875 = vmatprep.subr.mxu0 0.0
    %1876 = vmatpush2.msra.mxu0 0.0
    %1877 = vmatprep.subr.mxu0 0.0
    %1878 = vmatpush2.msra.mxu0 0.0
    %1879 = vmatprep.subr.mxu0 0.0
    %1880 = vmatpush2.msra.mxu0 0.0
    %1881 = vmatprep.subr.mxu0 0.0
    %1882 = vmatpush2.msra.mxu0 0.0
    %1883 = vmatprep.subr.mxu0 0.0
    %1884 = vmatpush2.msra.mxu0 0.0
    %1885 = vmatprep.subr.mxu0 0.0
    %1886 = vmatpush2.msra.mxu0 0.0
    %1887 = vmatprep.subr.mxu0 0.0
    %1888 = vmatpush2.msra.mxu0 0.0
    %1889 = vmatprep.subr.mxu0 0.0
    %1890 = vmatpush2.msra.mxu0 0.0
    %1891 = vmatprep.subr.mxu0 0.0
    %1892 = vmatpush2.msra.mxu0 0.0
    %1893 = vmatprep.subr.mxu0 0.0
    %1894 = vmatpush2.msra.mxu0 0.0
    %1895 = vmatprep.subr.mxu0 0.0
    %1896 = vmatpush2.msra.mxu0 0.0
    %1897 = vmatprep.subr.mxu0 0.0
    %1898 = vmatpush2.msra.mxu0 0.0
    %1899 = vmatprep.subr.mxu0 0.0
    %1900 = vmatpush2.msra.mxu0 0.0
    %1901 = vmatprep.subr.mxu0 0.0
    %1902 = vmatpush2.msra.mxu0 0.0
    %1903 = vmatprep.mubr.f32.mxu0 0.0
    %1904 = vmatmul.mubr.f32.gmra.mxu0 %v1834
    %v1905 = vpop.f32.mrf.mxu0
    %v1906 = vadd.f32 0.0, %v1905
    %v1907 = vpop.f32.mrf.mxu0
    %1908 = vmatprep.mubr.f32.mxu0 0.0
    %1909 = vmatmul.mubr.f32.gmra.mxu0 %v1837
    %v1910 = vpop.f32.mrf.mxu0
    %v1911 = vadd.f32 0.0, %v1910
    %v1912 = vpop.f32.mrf.mxu0
    %1913 = vdwg.mxu0
    %v1914 = vxor.u32 %v1906, 2147483648
    %v1915 = vxor.u32 %v1911, 2147483648
    %v1916 = vmul.f32 %v1914, 1.442695
    %v1917 = vpow.pop %v1916
    %v1918 = vmul.f32 %v1915, 1.442695
    %v1919 = vpow.pop %v1918
    %v1920 = vadd.f32 %v1917, 1.0
    %v1921 = vadd.f32 %v1919, 1.0
    %v1922 = vrcp.pop %v1920
    %v1923 = vmul.f32 1.0, %v1922
    %v1924 = vrcp.pop %v1921
    %v1925 = vmul.f32 1.0, %v1924
    %v1926 = vmul.f32 %v1906, %v1923
    %v1927 = vmul.f32 %v1911, %v1925
    %1930 = vrot.lane.b32.xlu0 %v1906, 64
    %v1931 = vpop.permute.xlu0 %1930
    %1932 = vrot.lane.b32.xlu0 %v1911, 64
    %v1933 = vpop.permute.xlu0 %1932
    %v1936 = vmul.f32 %v1926, %v1931
    %v1937 = vmul.f32 %v1927, %v1933
    %v1938 = vld [vmem:[%s9] sm:$0xff]
    %v1939 = vld [vmem:[%s9 + $0x8] sm:$0xff]
    %v1940 = vld [vmem:[%s9 + $0x10] sm:$0xff]
    %v1941 = vld [vmem:[%s9 + $0x18] sm:$0xff]
    %v1942 = vld [vmem:[%s9 + $0x20] sm:$0xff]
    %v1943 = vld [vmem:[%s9 + $0x28] sm:$0xff]
    %v1944 = vld [vmem:[%s9 + $0x30] sm:$0xff]
    %v1945 = vld [vmem:[%s9 + $0x38] sm:$0xff]
    %vm1946 = vcmask 523264
    %v1948 = vsel %vm1946, %v1936, 0
    %v1951 = vsel %vm1946, %v1937, 0
    %1953 = vmatprep.subr.mxu0 0.0
    %1954 = vmatpush1.msra.mxu0 0.0
    %1955 = vmatprep.subr.mxu0 0.0
    %1956 = vmatpush1.msra.mxu0 0.0
    %1957 = vmatprep.subr.mxu0 0.0
    %1958 = vmatpush1.msra.mxu0 0.0
    %1959 = vmatprep.subr.mxu0 0.0
    %1960 = vmatpush1.msra.mxu0 0.0
    %1961 = vmatprep.subr.mxu0 0.0
    %1962 = vmatpush1.msra.mxu0 0.0
    %1963 = vmatprep.subr.mxu0 0.0
    %1964 = vmatpush1.msra.mxu0 0.0
    %1965 = vmatprep.subr.mxu0 0.0
    %1966 = vmatpush1.msra.mxu0 0.0
    %1967 = vmatprep.subr.mxu0 0.0
    %1968 = vmatpush1.msra.mxu0 0.0
    %1969 = vmatprep.subr.mxu0 0.0
    %1970 = vmatpush1.msra.mxu0 %v1945
    %1971 = vmatprep.subr.mxu0 0.0
    %1972 = vmatpush1.msra.mxu0 %v1944
    %1973 = vmatprep.subr.mxu0 0.0
    %1974 = vmatpush1.msra.mxu0 %v1943
    %1975 = vmatprep.subr.mxu0 0.0
    %1976 = vmatpush1.msra.mxu0 %v1942
    %1977 = vmatprep.subr.mxu0 0.0
    %1978 = vmatpush1.msra.mxu0 %v1941
    %1979 = vmatprep.subr.mxu0 0.0
    %1980 = vmatpush1.msra.mxu0 %v1940
    %1981 = vmatprep.subr.mxu0 0.0
    %1982 = vmatpush1.msra.mxu0 %v1939
    %1983 = vmatprep.subr.mxu0 0.0
    %1984 = vmatpush1.msra.mxu0 %v1938
    %1985 = vmatprep.subr.mxu0 0.0
    %1986 = vmatpush2.msra.mxu0 0.0
    %1987 = vmatprep.subr.mxu0 0.0
    %1988 = vmatpush2.msra.mxu0 0.0
    %1989 = vmatprep.subr.mxu0 0.0
    %1990 = vmatpush2.msra.mxu0 0.0
    %1991 = vmatprep.subr.mxu0 0.0
    %1992 = vmatpush2.msra.mxu0 0.0
    %1993 = vmatprep.subr.mxu0 0.0
    %1994 = vmatpush2.msra.mxu0 0.0
    %1995 = vmatprep.subr.mxu0 0.0
    %1996 = vmatpush2.msra.mxu0 0.0
    %1997 = vmatprep.subr.mxu0 0.0
    %1998 = vmatpush2.msra.mxu0 0.0
    %1999 = vmatprep.subr.mxu0 0.0
    %2000 = vmatpush2.msra.mxu0 0.0
    %2001 = vmatprep.subr.mxu0 0.0
    %2002 = vmatpush2.msra.mxu0 0.0
    %2003 = vmatprep.subr.mxu0 0.0
    %2004 = vmatpush2.msra.mxu0 0.0
    %2005 = vmatprep.subr.mxu0 0.0
    %2006 = vmatpush2.msra.mxu0 0.0
    %2007 = vmatprep.subr.mxu0 0.0
    %2008 = vmatpush2.msra.mxu0 0.0
    %2009 = vmatprep.subr.mxu0 0.0
    %2010 = vmatpush2.msra.mxu0 0.0
    %2011 = vmatprep.subr.mxu0 0.0
    %2012 = vmatpush2.msra.mxu0 0.0
    %2013 = vmatprep.subr.mxu0 0.0
    %2014 = vmatpush2.msra.mxu0 0.0
    %2015 = vmatprep.subr.mxu0 0.0
    %2016 = vmatpush2.msra.mxu0 0.0
    %2017 = vmatprep.mubr.f32.mxu0 0.0
    %2018 = vmatmul.mubr.f32.gmra.mxu0 %v1948
    %v2019 = vpop.f32.mrf.mxu0
    %v2020 = vadd.f32 0.0, %v2019
    %v2021 = vpop.f32.mrf.mxu0
    %2022 = vmatprep.mubr.f32.mxu0 0.0
    %2023 = vmatmul.mubr.f32.gmra.mxu0 %v1951
    %v2024 = vpop.f32.mrf.mxu0
    %v2025 = vadd.f32 0.0, %v2024
    %v2026 = vpop.f32.mrf.mxu0
    %2027 = vdwg.mxu0
    %v2028 = vadd.f32 %v1802, %v2020
    %v2029 = vadd.f32 %v1803, %v2025
    %2030 = vst.msk [vmem:[#allocation8] sm:$0xff] %vm78, %v2028
    %2031 = vst.msk [vmem:[#allocation8 + $0x8] sm:$0xff] %vm78, %v2029
    // Predicated region
    $region54: #{tpu_custom_call.1} parent=1 // pred_check
      _
    $region55: #{tpu_custom_call.1} parent=1 // pred_check_branch
      %2033 = sbr.rel (0) target = $region57
    $region56: #{tpu_custom_call.1} parent=1 // pred_region
      %s2035 = ssub.s32 256, 256
      %2036 = vsyncadd [#allocation4], %s2035
      %s2037 = sshll.u32 [#allocation8], 4
      %s2038 = int_to_ptr.vmem [resolvable:$true] %s2037
      %2043 = dma.vmem_to_hbm [thread:$0]  %s2038, 256, %s10, [#allocation4], 128, 128, 8
    $region57: #{tpu_custom_call.1} parent=1 // pred_fallthru
      _
    // Predicated region
    $region58: #{tpu_custom_call.1} parent=1 // pred_check
      _
    $region59: #{tpu_custom_call.1} parent=1 // pred_check_branch
      %2045 = sbr.rel (0) target = $region61
    $region60: #{tpu_custom_call.1} parent=1 // pred_region
      %2046 = dma.done [#allocation4], 256
    $region61: #{tpu_custom_call.1} parent=1 // pred_fallthru
      _
    %2047 = vsyncpa [#allocation3], 1
    %2048 = vsyncpa [#allocation6], 1
    %2049 = vsyncpa [#allocation4], 1

</llo_original>
